<compile_context>
chip_gen: v6e
topology: v6e:2x2x1
jax: 0.10.0
libtpu: 0.0.40
codegen_flags: <defaults>
</compile_context>

<pallas_src>
import jax
import jax.numpy as jnp
from jax.experimental import pallas as pl
from jax.experimental.pallas import tpu as pltpu

# ------------------------------ model sizes --------------------------------
HIDDEN = 32        # hidden_size
OUTPUT = 16        # output_size (vocab)
MAXLEN = 52        # max_length (MAX_LENGTH)
MLP_W = 32         # build_mlp width
BATCH = 2

# ------------------- packed slab layouts (128-lane aligned) -----------------
# W0: fused input projection, shape (K0, W0_LANES), K0 = OUTPUT + HIDDEN + 1
#     rows [0,O)   : "emb side"  (pre-multiplied by the embedding table E)
#     rows [O,O+H) : "hid side"
#     row  O+H     : bias row (driven by the constant-1 lane of the LHS)
K0 = OUTPUT + HIDDEN + 1                 # 49
W0_ATT = 0                               # duplicated attention logits, width 2*L = 104
W0_CMB = 128                             # emb half of attn_combine, width H
W0_HHR = 256                             # GRU hh r-gate, width H
W0_HHZ = 384                             # GRU hh z-gate, width H
W0_HHN = 512                             # GRU hh n-gate, width H
W0_LANES = 640

# W1: per-step second-stage weights, shape (K1, W1_LANES), K1 = HIDDEN + 1
#     rows [0,H) : weights, row H : bias row
K1 = HIDDEN + 1                          # 33
W1_IHR = 0                               # GRU ih r-gate, width H
W1_IHZ = 128                             # GRU ih z-gate, width H
W1_IHN = 256                             # GRU ih n-gate, width H
W1_M1 = 384                              # MLP layer 1, width 32
W1_M2 = 512                              # MLP layer 2, width 32
W1_M3 = 640                              # MLP layer 3, width 32
W1_M4 = 768                              # MLP layer 4, width OUTPUT
W1_CA = 896                              # attn_combine wc_a (for enc @ wc_a precompute)
W1_LANES = 1024

# per-step output slab: (B, 384), 128-aligned segments
O_ATTN = 0                               # attention weights, width L
O_LOGP = 128                             # log-probs, width OUTPUT
O_HID = 256                              # new hidden, width H
OUT_LANES = 384


# --------------------------------- kernel -----------------------------------
def decoder_kernel(tok_ref, hid0_ref, enc_ref, w0_ref, w1_ref, out_ref,
                   h_scr, ctx_scr):
    H, L, O, W = HIDDEN, MAXLEN, OUTPUT, MLP_W
    t = pl.program_id(0)

    # ---- step 0: load initial hidden, precompute encoder_outputs @ wc_a ----
    @pl.when(t == 0)
    def _init():
        h_scr[...] = hid0_ref[...]
        ctx_scr[...] = jnp.dot(enc_ref[...], w1_ref[:H, W1_CA:W1_CA + H],
                               preferred_element_type=jnp.float32)      # (B*L, H)

    tok = tok_ref[0]                                   # (B, 1) int32
    B = tok.shape[0]
    onehot = (jax.lax.broadcasted_iota(jnp.int32, (B, O), 1) == tok
              ).astype(jnp.float32)                    # (B, O) embedding selector
    h = h_scr[...]                                     # (B, H) carried hidden

    # ---- single fused projection: embedding lookup + attn + combine + GRU hh ----
    lhs = jnp.concatenate([onehot, h, jnp.ones((B, 1), jnp.float32)], axis=1)  # (B, 49)
    fused = jnp.dot(lhs, w0_ref[...], preferred_element_type=jnp.float32)      # (B, 640)

    # ---- attention softmax over L (duplicated-row layout for the block-diag dot) ----
    dup = fused[:, W0_ATT:W0_ATT + 2 * L]              # (B, 2L): [logits_b | logits_b]
    m = jnp.max(dup[:, :L], axis=1, keepdims=True)
    p = jnp.exp(dup - m)                               # (B, 2L)
    inv = 1.0 / jnp.sum(p[:, :L], axis=1, keepdims=True)   # exact reciprocal (output!)
    attn_w = p[:, :L] * inv                            # (B, L)

    # ---- attn_applied @ wc_a as one block-diagonal masked dot vs precomputed ctx ----
    col = jax.lax.broadcasted_iota(jnp.int32, (B, 2 * L), 1)
    row = jax.lax.broadcasted_iota(jnp.int32, (B, 2 * L), 0)
    in_block = (col >= row * L) & (col < (row + 1) * L)
    attn_ctx = jnp.dot(jnp.where(in_block, p, 0.0), ctx_scr[...],
                       preferred_element_type=jnp.float32) * inv        # (B, H)

    # ---- attn_combine + ReLU (emb half + bias already in `fused`) ----
    x = jnp.maximum(fused[:, W0_CMB:W0_CMB + H] + attn_ctx, 0.0)        # (B, H)

    # ---- GRU cell (PyTorch gate order r, z, n); hh gates come from `fused` ----
    ih = (jnp.dot(x, w1_ref[:H, :W1_IHN + H], preferred_element_type=jnp.float32)
          + w1_ref[H:H + 1, :W1_IHN + H])              # (B, 288); gates at 0/128/256
    r = jax.nn.sigmoid(ih[:, W1_IHR:W1_IHR + H] + fused[:, W0_HHR:W0_HHR + H])
    z = jax.nn.sigmoid(ih[:, W1_IHZ:W1_IHZ + H] + fused[:, W0_HHZ:W0_HHZ + H])
    n = jnp.tanh(ih[:, W1_IHN:W1_IHN + H] + r * fused[:, W0_HHN:W0_HHN + H])
    h_new = (1.0 - z) * n + z * h                      # (B, H)

    # ---- output MLP: 3x (Linear -> tanh) + Linear (biases = slab row H) ----
    a = jnp.tanh(jnp.dot(h_new, w1_ref[:H, W1_M1:W1_M1 + W],
                         preferred_element_type=jnp.float32)
                 + w1_ref[H:H + 1, W1_M1:W1_M1 + W])
    a = jnp.tanh(jnp.dot(a, w1_ref[:W, W1_M2:W1_M2 + W],
                         preferred_element_type=jnp.float32)
                 + w1_ref[H:H + 1, W1_M2:W1_M2 + W])
    a = jnp.tanh(jnp.dot(a, w1_ref[:W, W1_M3:W1_M3 + W],
                         preferred_element_type=jnp.float32)
                 + w1_ref[H:H + 1, W1_M3:W1_M3 + W])
    o = (jnp.dot(a, w1_ref[:W, W1_M4:W1_M4 + O],
                 preferred_element_type=jnp.float32)
         + w1_ref[H:H + 1, W1_M4:W1_M4 + O])           # (B, O)

    # ---- log_softmax over the vocab dim ----
    om = jnp.max(o, axis=1, keepdims=True)
    s = o - om
    logp = s - jnp.log(jnp.sum(jnp.exp(s), axis=1, keepdims=True))      # (B, O)

    # ---- carry hidden; direct 128-aligned segment stores (no concatenate/pad) ----
    h_scr[...] = h_new
    out_ref[0, :, O_ATTN:O_ATTN + L] = attn_w
    out_ref[0, :, O_LOGP:O_LOGP + O] = logp
    out_ref[0, :, O_HID:O_HID + H] = h_new


# -------------------------------- wrappers -----------------------------------
def decode_steps(tokens, hidden, encoder_outputs, packed):
    """Run T autoregressive decoder steps inside ONE pallas_call.

    tokens: (T, B) int32; hidden: (B, 1, H) or (B, H) f32; encoder_outputs: (B, L, H).
    Returns per-step (attn (T,B,L), log_probs (T,B,O), hidden (T,B,H))."""
    T, B = tokens.shape
    H, L, O = HIDDEN, MAXLEN, OUTPUT

    tok3 = tokens.reshape(T, B, 1).astype(jnp.int32)
    hid0 = hidden.reshape(B, H).astype(jnp.float32)
    enc_flat = encoder_outputs.reshape(B * L, H).astype(jnp.float32)

    out = pl.pallas_call(
        decoder_kernel,
        out_shape=jax.ShapeDtypeStruct((T, B, OUT_LANES), jnp.float32),
        grid_spec=pltpu.PrefetchScalarGridSpec(
            num_scalar_prefetch=0,
            grid=(T,),
            in_specs=[
                pl.BlockSpec((1, B, 1), lambda t: (t, 0, 0)),          # token ids
                pl.BlockSpec((B, H), lambda t: (0, 0)),                # initial hidden
                pl.BlockSpec((B * L, H), lambda t: (0, 0)),            # enc (resident)
                pl.BlockSpec((K0, W0_LANES), lambda t: (0, 0)),        # W0 slab (resident)
                pl.BlockSpec((K1, W1_LANES), lambda t: (0, 0)),        # W1 slab (resident)
            ],
            out_specs=pl.BlockSpec((1, B, OUT_LANES), lambda t: (t, 0, 0)),
            scratch_shapes=[
                pltpu.VMEM((B, H), jnp.float32),                       # carried hidden
                pltpu.VMEM((B * L, H), jnp.float32),                   # enc @ wc_a
            ],
        ),
        compiler_params=pltpu.CompilerParams(
            dimension_semantics=("arbitrary",)),                        # sequential steps
    )(tok3, hid0, enc_flat, packed["w0"], packed["w1"])

    attn = out[:, :, O_ATTN:O_ATTN + L]
    logp = out[:, :, O_LOGP:O_LOGP + O]
    hids = out[:, :, O_HID:O_HID + H]
    return attn, logp, hids


def batch_attn_decoder_forward(input_ids, hidden, encoder_outputs, packed):
    """Single forward step with the PyTorch module's output shapes."""
    B = input_ids.shape[0]
    H, L, O = HIDDEN, MAXLEN, OUTPUT
    attn, logp, hids = decode_steps(input_ids.reshape(1, B), hidden,
                                    encoder_outputs, packed)
    attn_weights = attn[0].reshape(B, 1, L)
    log_probs = logp.reshape(1, B, O)          # GRU output layout (seq=1, B, O)
    new_hidden = hids.reshape(1, B, H)
    probs = jnp.exp(log_probs)                 # Categorical(probs=...) parameters
    return probs, log_probs, new_hidden, attn_weights


# -------------------------- deterministic parameters -------------------------
def init_params(key):
    H, L, O, W = HIDDEN, MAXLEN, OUTPUT, MLP_W
    ks = jax.random.split(key, 32)
    k = iter(ks)

    def u(key_, shape, fan_in):
        bound = 1.0 / jnp.sqrt(jnp.float32(fan_in))
        return jax.random.uniform(key_, shape, jnp.float32, -bound, bound)

    p = {}
    p["embedding"] = jax.random.normal(next(k), (O, H), jnp.float32)

    # attn: Linear(2H -> L); PyTorch weight (L, 2H); split + transpose -> (H, L)
    wa = u(next(k), (L, 2 * H), 2 * H)
    p["wa_e"], p["wa_h"] = wa[:, :H].T, wa[:, H:].T
    p["ba"] = u(next(k), (1, L), 2 * H)

    # attn_combine: Linear(2H -> H)
    wc = u(next(k), (H, 2 * H), 2 * H)
    p["wc_e"], p["wc_a"] = wc[:, :H].T, wc[:, H:].T
    p["bc"] = u(next(k), (1, H), 2 * H)

    # GRU(H, H): weight_ih/hh (3H, H), gate order r, z, n
    w_ih = u(next(k), (3 * H, H), H)
    w_hh = u(next(k), (3 * H, H), H)
    b_ih = u(next(k), (1, 3 * H), H)
    b_hh = u(next(k), (1, 3 * H), H)
    p["w_ir"], p["w_iz"], p["w_in"] = (w_ih[:H].T, w_ih[H:2 * H].T, w_ih[2 * H:].T)
    p["w_hr"], p["w_hz"], p["w_hn"] = (w_hh[:H].T, w_hh[H:2 * H].T, w_hh[2 * H:].T)
    p["b_ir"], p["b_iz"], p["b_in"] = (b_ih[:, :H], b_ih[:, H:2 * H], b_ih[:, 2 * H:])
    p["b_hr"], p["b_hz"], p["b_hn"] = (b_hh[:, :H], b_hh[:, H:2 * H], b_hh[:, 2 * H:])

    # out MLP: H->32, 32->32, 32->32, 32->O (PyTorch weight (out,in) -> store transposed)
    p["w1"], p["b1"] = u(next(k), (W, H), H).T, u(next(k), (1, W), H)
    p["w2"], p["b2"] = u(next(k), (W, W), W).T, u(next(k), (1, W), W)
    p["w3"], p["b3"] = u(next(k), (W, W), W).T, u(next(k), (1, W), W)
    p["w4"], p["b4"] = u(next(k), (O, W), W).T, u(next(k), (1, O), W)
    return p


def pack_params(p):
    """One-time packing into two 128-lane-aligned slabs (embedding + biases folded)."""
    H, L, O, W = HIDDEN, MAXLEN, OUTPUT, MLP_W
    E = p["embedding"]                                          # (O, H)
    zOH = jnp.zeros((O, H), jnp.float32)
    zHH = jnp.zeros((H, H), jnp.float32)

    # W0 columns: rows = [emb-side (O) | hid-side (H) | bias (1)]
    att = jnp.concatenate([E @ p["wa_e"], p["wa_h"], p["ba"]], axis=0)       # (K0, L)
    cmb = jnp.concatenate([E @ p["wc_e"], zHH, p["bc"]], axis=0)             # (K0, H)
    hhr = jnp.concatenate([zOH, p["w_hr"], p["b_hr"]], axis=0)
    hhz = jnp.concatenate([zOH, p["w_hz"], p["b_hz"]], axis=0)
    hhn = jnp.concatenate([zOH, p["w_hn"], p["b_hn"]], axis=0)

    w0 = jnp.zeros((K0, W0_LANES), jnp.float32)
    w0 = w0.at[:, W0_ATT:W0_ATT + L].set(att)
    w0 = w0.at[:, W0_ATT + L:W0_ATT + 2 * L].set(att)     # duplicated copy for block-diag
    w0 = w0.at[:, W0_CMB:W0_CMB + H].set(cmb)
    w0 = w0.at[:, W0_HHR:W0_HHR + H].set(hhr)
    w0 = w0.at[:, W0_HHZ:W0_HHZ + H].set(hhz)
    w0 = w0.at[:, W0_HHN:W0_HHN + H].set(hhn)

    def wb(wmat, brow):                                   # (H, width) + (1, width)
        return jnp.concatenate([wmat, brow], axis=0)      # -> (K1, width)

    w1 = jnp.zeros((K1, W1_LANES), jnp.float32)
    w1 = w1.at[:, W1_IHR:W1_IHR + H].set(wb(p["w_ir"], p["b_ir"]))
    w1 = w1.at[:, W1_IHZ:W1_IHZ + H].set(wb(p["w_iz"], p["b_iz"]))
    w1 = w1.at[:, W1_IHN:W1_IHN + H].set(wb(p["w_in"], p["b_in"]))
    w1 = w1.at[:, W1_M1:W1_M1 + W].set(wb(p["w1"], p["b1"]))
    w1 = w1.at[:, W1_M2:W1_M2 + W].set(wb(p["w2"], p["b2"]))
    w1 = w1.at[:, W1_M3:W1_M3 + W].set(wb(p["w3"], p["b3"]))
    w1 = w1.at[:, W1_M4:W1_M4 + O].set(wb(p["w4"], p["b4"]))
    w1 = w1.at[:, W1_CA:W1_CA + H].set(wb(p["wc_a"], jnp.zeros((1, H), jnp.float32)))

    return {"w0": w0, "w1": w1}


# --------------------------- pure-JAX reference -------------------------------
def reference_step(p, token_ids, h, enc):
    """token_ids: (B,), h: (B,H), enc: (B,L,H) -> attn (B,L), logp (B,O), h_new (B,H)."""
    emb = p["embedding"][token_ids]
    logits = emb @ p["wa_e"] + h @ p["wa_h"] + p["ba"]
    attn_w = jax.nn.softmax(logits, axis=1)
    attn_applied = jnp.einsum("bl,blh->bh", attn_w, enc)
    x = jax.nn.relu(emb @ p["wc_e"] + attn_applied @ p["wc_a"] + p["bc"])
    r = jax.nn.sigmoid(x @ p["w_ir"] + p["b_ir"] + h @ p["w_hr"] + p["b_hr"])
    z = jax.nn.sigmoid(x @ p["w_iz"] + p["b_iz"] + h @ p["w_hz"] + p["b_hz"])
    n = jnp.tanh(x @ p["w_in"] + p["b_in"] + r * (h @ p["w_hn"] + p["b_hn"]))
    h_new = (1 - z) * n + z * h
    a = jnp.tanh(h_new @ p["w1"] + p["b1"])
    a = jnp.tanh(a @ p["w2"] + p["b2"])
    a = jnp.tanh(a @ p["w3"] + p["b3"])
    o = a @ p["w4"] + p["b4"]
    logp = jax.nn.log_softmax(o, axis=1)
    return attn_w, logp, h_new


# ----------------------------------- main -------------------------------------
if __name__ == "__main__":
    key = jax.random.PRNGKey(0)
    kp, ki, kh, ke, kt = jax.random.split(key, 5)

    params = init_params(kp)
    packed = pack_params(params)                 # one-time packing into 2 slabs

    B, H, L, O = BATCH, HIDDEN, MAXLEN, OUTPUT
    input_ids = jax.random.randint(ki, (B,), 0, O, dtype=jnp.int32)
    hidden = jax.random.normal(kh, (B, 1, H), jnp.float32)
    encoder_outputs = jax.random.normal(ke, (B, L, H), jnp.float32)

    # ---- single-step forward (matches BatchAttnDecoder.forward) ----
    forward = jax.jit(batch_attn_decoder_forward)
    probs, log_probs, new_hidden, attn_weights = jax.block_until_ready(
        forward(input_ids, hidden, encoder_outputs, packed))

    ref_attn, ref_logp, ref_h = reference_step(params, input_ids,
                                               hidden.reshape(B, H), encoder_outputs)
    assert jnp.allclose(attn_weights.reshape(B, L), ref_attn, atol=1e-4, rtol=1e-4)
    assert jnp.allclose(log_probs.reshape(B, O), ref_logp, atol=1e-4, rtol=1e-4)
    assert jnp.allclose(new_hidden.reshape(B, H), ref_h, atol=1e-4, rtol=1e-4)
    assert probs.shape == (1, B, O)

    # ---- multi-step decode in one kernel launch (weights stay VMEM-resident) ----
    T = 8
    tokens = jax.random.randint(kt, (T, B), 0, O, dtype=jnp.int32)
    decode_jit = jax.jit(decode_steps)
    attn_seq, logp_seq, hid_seq = jax.block_until_ready(
        decode_jit(tokens, hidden, encoder_outputs, packed))

    h_ref = hidden.reshape(B, H)
    for t in range(T):
        ra, rl, h_ref = reference_step(params, tokens[t], h_ref, encoder_outputs)
        assert jnp.allclose(attn_seq[t], ra, atol=3e-4, rtol=1e-3)
        assert jnp.allclose(logp_seq[t], rl, atol=3e-4, rtol=1e-3)
        assert jnp.allclose(hid_seq[t], h_ref, atol=3e-4, rtol=1e-3)

    print("KERNEL_OK")
</pallas_src>

<mosaic_0001>
module attributes {stable_mosaic.version = 11 : i64} {
  func.func @decoder_kernel(%arg0: i32, %arg1: memref<1x2x1xi32, #tpu.memory_space<vmem>>, %arg2: memref<2x32xf32, #tpu.memory_space<vmem>>, %arg3: memref<104x32xf32, #tpu.memory_space<vmem>>, %arg4: memref<49x640xf32, #tpu.memory_space<vmem>>, %arg5: memref<33x1024xf32, #tpu.memory_space<vmem>>, %arg6: memref<1x2x384xf32, #tpu.memory_space<vmem>>, %arg7: memref<2x32xf32, #tpu.memory_space<vmem>>, %arg8: memref<104x32xf32, #tpu.memory_space<vmem>>) attributes {dimension_semantics = [#tpu.dimension_semantics<arbitrary>], iteration_bounds = array<i64: 1>, scalar_prefetch = 0 : i64, scratch_operands = 2 : i64, tpu.core_type = #tpu.core_type<tc>, window_params = [{transform_indices = @transform_0, window_bounds = array<i64: 1, 2, 1>}, {pipeline_mode = #tpu.pipeline_mode<synchronous>, transform_indices = @transform_1, window_bounds = array<i64: 2, 32>}, {pipeline_mode = #tpu.pipeline_mode<synchronous>, transform_indices = @transform_2, window_bounds = array<i64: 104, 32>}, {pipeline_mode = #tpu.pipeline_mode<synchronous>, transform_indices = @transform_3, window_bounds = array<i64: 49, 640>}, {pipeline_mode = #tpu.pipeline_mode<synchronous>, transform_indices = @transform_4, window_bounds = array<i64: 33, 1024>}, {transform_indices = @transform_5, window_bounds = array<i64: 1, 2, 384>}]} {
    %c0_i32 = arith.constant 0 : i32
    %0 = arith.cmpi eq, %arg0, %c0_i32 : i32
    %1 = arith.extui %0 : i1 to i32
    %c0_i32_0 = arith.constant 0 : i32
    %2 = arith.cmpi ne, %1, %c0_i32_0 : i32
    scf.if %2 {
      %c0_51 = arith.constant 0 : index
      %c0_52 = arith.constant 0 : index
      %125 = vector.load %arg2[%c0_51, %c0_52] : memref<2x32xf32, #tpu.memory_space<vmem>>, vector<2x32xf32>
      %c0_53 = arith.constant 0 : index
      %c0_54 = arith.constant 0 : index
      %126 = vector.load %arg7[%c0_53, %c0_54] : memref<2x32xf32, #tpu.memory_space<vmem>>, vector<2x32xf32>
      tpu.vector_store %arg7[%c0_53, %c0_54], %125 {strides = array<i32>} : memref<2x32xf32, #tpu.memory_space<vmem>>, vector<2x32xf32>,
      %c0_55 = arith.constant 0 : index
      %c0_56 = arith.constant 0 : index
      %127 = vector.load %arg3[%c0_55, %c0_56] : memref<104x32xf32, #tpu.memory_space<vmem>>, vector<104x32xf32>
      %c0_57 = arith.constant 0 : index
      %c896 = arith.constant 896 : index
      %128 = vector.load %arg5[%c0_57, %c896] : memref<33x1024xf32, #tpu.memory_space<vmem>>, vector<32x32xf32>
      %cst_58 = arith.constant dense<0.000000e+00> : vector<104x32xf32>
      %129 = tpu.matmul %127, %128, %cst_58 {dimension_numbers = #tpu.dot_dimension_numbers<[1], [0], [0], [1], [0, 0, 1, 1], [], []>} : vector<104x32xf32>, vector<32x32xf32>, vector<104x32xf32> -> vector<104x32xf32>
      %c0_59 = arith.constant 0 : index
      %c0_60 = arith.constant 0 : index
      %130 = vector.load %arg8[%c0_59, %c0_60] : memref<104x32xf32, #tpu.memory_space<vmem>>, vector<104x32xf32>
      tpu.vector_store %arg8[%c0_59, %c0_60], %129 {strides = array<i32>} : memref<104x32xf32, #tpu.memory_space<vmem>>, vector<104x32xf32>,
    } else {
    }
    %c0 = arith.constant 0 : index
    %c0_1 = arith.constant 0 : index
    %c0_2 = arith.constant 0 : index
    %3 = vector.load %arg1[%c0, %c0_1, %c0_2] : memref<1x2x1xi32, #tpu.memory_space<vmem>>, vector<1x2x1xi32>
    %4 = vector.shape_cast %3 : vector<1x2x1xi32> to vector<2x1xi32>
    %5 = tpu.iota {dimensions = array<i32: 1>} : vector<2x16xi32>
    %6 = vector.broadcast %4 : vector<2x1xi32> to vector<2x16xi32>
    %7 = arith.cmpi eq, %5, %6 : vector<2x16xi32>
    %8 = arith.extui %7 : vector<2x16xi1> to vector<2x16xi32>
    %9 = arith.sitofp %8 : vector<2x16xi32> to vector<2x16xf32>
    %c0_3 = arith.constant 0 : index
    %c0_4 = arith.constant 0 : index
    %10 = vector.load %arg7[%c0_3, %c0_4] : memref<2x32xf32, #tpu.memory_space<vmem>>, vector<2x32xf32>
    %cst = arith.constant 1.000000e+00 : f32
    %11 = vector.broadcast %cst : f32 to vector<2x1xf32>
    %12 = tpu.concatenate %9, %10, %11 in 1 : vector<2x16xf32>, vector<2x32xf32>, vector<2x1xf32> -> vector<2x49xf32>
    %c0_5 = arith.constant 0 : index
    %c0_6 = arith.constant 0 : index
    %13 = vector.load %arg4[%c0_5, %c0_6] : memref<49x640xf32, #tpu.memory_space<vmem>>, vector<49x640xf32>
    %cst_7 = arith.constant dense<0.000000e+00> : vector<2x640xf32>
    %14 = tpu.matmul %12, %13, %cst_7 {dimension_numbers = #tpu.dot_dimension_numbers<[1], [0], [0], [1], [0, 0, 1, 1], [], []>} : vector<2x49xf32>, vector<49x640xf32>, vector<2x640xf32> -> vector<2x640xf32>
    %15 = vector.extract_strided_slice %14 {offsets = [0, 0], sizes = [2, 104], strides = [1, 1]} : vector<2x640xf32> to vector<2x104xf32>
    %16 = vector.extract_strided_slice %15 {offsets = [0, 0], sizes = [2, 52], strides = [1, 1]} : vector<2x104xf32> to vector<2x52xf32>
    %cst_8 = arith.constant dense<0xFF800000> : vector<2xf32>
    %17 = vector.multi_reduction <maximumf>, %16, %cst_8 [1] : vector<2x52xf32> to vector<2xf32>
    %18 = vector.shape_cast %17 : vector<2xf32> to vector<2x1xf32>
    %19 = vector.broadcast %18 : vector<2x1xf32> to vector<2x104xf32>
    %20 = arith.subf %15, %19 : vector<2x104xf32>
    %21 = math.exp %20 : vector<2x104xf32>
    %22 = vector.extract_strided_slice %21 {offsets = [0, 0], sizes = [2, 52], strides = [1, 1]} : vector<2x104xf32> to vector<2x52xf32>
    %cst_9 = arith.constant dense<0.000000e+00> : vector<2xf32>
    %23 = vector.multi_reduction <add>, %22, %cst_9 [1] : vector<2x52xf32> to vector<2xf32>
    %24 = vector.shape_cast %23 : vector<2xf32> to vector<2x1xf32>
    %cst_10 = arith.constant 1.000000e+00 : f32
    %25 = vector.broadcast %cst_10 : f32 to vector<2x1xf32>
    %26 = arith.divf %25, %24 : vector<2x1xf32>
    %27 = vector.extract_strided_slice %21 {offsets = [0, 0], sizes = [2, 52], strides = [1, 1]} : vector<2x104xf32> to vector<2x52xf32>
    %28 = vector.broadcast %26 : vector<2x1xf32> to vector<2x52xf32>
    %29 = arith.mulf %27, %28 : vector<2x52xf32>
    %30 = tpu.iota {dimensions = array<i32: 1>} : vector<2x104xi32>
    %31 = tpu.iota {dimensions = array<i32: 0>} : vector<2x104xi32>
    %c52_i32 = arith.constant 52 : i32
    %32 = vector.broadcast %c52_i32 : i32 to vector<2x104xi32>
    %33 = arith.muli %31, %32 : vector<2x104xi32>
    %34 = arith.cmpi sge, %30, %33 : vector<2x104xi32>
    %c1_i32 = arith.constant 1 : i32
    %35 = vector.broadcast %c1_i32 : i32 to vector<2x104xi32>
    %36 = arith.addi %31, %35 : vector<2x104xi32>
    %c52_i32_11 = arith.constant 52 : i32
    %37 = vector.broadcast %c52_i32_11 : i32 to vector<2x104xi32>
    %38 = arith.muli %36, %37 : vector<2x104xi32>
    %39 = arith.cmpi slt, %30, %38 : vector<2x104xi32>
    %40 = arith.andi %34, %39 : vector<2x104xi1>
    %cst_12 = arith.constant 0.000000e+00 : f32
    %41 = vector.broadcast %cst_12 : f32 to vector<2x104xf32>
    %42 = arith.select %40, %21, %41 : vector<2x104xi1>, vector<2x104xf32>
    %c0_13 = arith.constant 0 : index
    %c0_14 = arith.constant 0 : index
    %43 = vector.load %arg8[%c0_13, %c0_14] : memref<104x32xf32, #tpu.memory_space<vmem>>, vector<104x32xf32>
    %cst_15 = arith.constant dense<0.000000e+00> : vector<2x32xf32>
    %44 = tpu.matmul %42, %43, %cst_15 {dimension_numbers = #tpu.dot_dimension_numbers<[1], [0], [0], [1], [0, 0, 1, 1], [], []>} : vector<2x104xf32>, vector<104x32xf32>, vector<2x32xf32> -> vector<2x32xf32>
    %45 = vector.broadcast %26 : vector<2x1xf32> to vector<2x32xf32>
    %46 = arith.mulf %44, %45 : vector<2x32xf32>
    %47 = vector.extract_strided_slice %14 {offsets = [0, 128], sizes = [2, 32], strides = [1, 1]} : vector<2x640xf32> to vector<2x32xf32>
    %48 = arith.addf %47, %46 : vector<2x32xf32>
    %cst_16 = arith.constant 0.000000e+00 : f32
    %49 = vector.broadcast %cst_16 : f32 to vector<2x32xf32>
    %50 = arith.maximumf %48, %49 : vector<2x32xf32>
    %c0_17 = arith.constant 0 : index
    %c0_18 = arith.constant 0 : index
    %51 = vector.load %arg5[%c0_17, %c0_18] : memref<33x1024xf32, #tpu.memory_space<vmem>>, vector<32x288xf32>
    %cst_19 = arith.constant dense<0.000000e+00> : vector<2x288xf32>
    %52 = tpu.matmul %50, %51, %cst_19 {dimension_numbers = #tpu.dot_dimension_numbers<[1], [0], [0], [1], [0, 0, 1, 1], [], []>} : vector<2x32xf32>, vector<32x288xf32>, vector<2x288xf32> -> vector<2x288xf32>
    %c32 = arith.constant 32 : index
    %c0_20 = arith.constant 0 : index
    %53 = vector.load %arg5[%c32, %c0_20] : memref<33x1024xf32, #tpu.memory_space<vmem>>, vector<1x288xf32>
    %54 = vector.broadcast %53 : vector<1x288xf32> to vector<2x288xf32>
    %55 = arith.addf %52, %54 : vector<2x288xf32>
    %56 = vector.extract_strided_slice %55 {offsets = [0, 0], sizes = [2, 32], strides = [1, 1]} : vector<2x288xf32> to vector<2x32xf32>
    %57 = vector.extract_strided_slice %14 {offsets = [0, 256], sizes = [2, 32], strides = [1, 1]} : vector<2x640xf32> to vector<2x32xf32>
    %58 = arith.addf %56, %57 : vector<2x32xf32>
    %59 = arith.negf %58 : vector<2x32xf32>
    %60 = math.exp %59 : vector<2x32xf32>
    %cst_21 = arith.constant 1.000000e+00 : f32
    %61 = vector.broadcast %cst_21 : f32 to vector<2x32xf32>
    %62 = arith.addf %61, %60 : vector<2x32xf32>
    %63 = arith.divf %61, %62 : vector<2x32xf32>
    %64 = vector.extract_strided_slice %55 {offsets = [0, 128], sizes = [2, 32], strides = [1, 1]} : vector<2x288xf32> to vector<2x32xf32>
    %65 = vector.extract_strided_slice %14 {offsets = [0, 384], sizes = [2, 32], strides = [1, 1]} : vector<2x640xf32> to vector<2x32xf32>
    %66 = arith.addf %64, %65 : vector<2x32xf32>
    %67 = arith.negf %66 : vector<2x32xf32>
    %68 = math.exp %67 : vector<2x32xf32>
    %cst_22 = arith.constant 1.000000e+00 : f32
    %69 = vector.broadcast %cst_22 : f32 to vector<2x32xf32>
    %70 = arith.addf %69, %68 : vector<2x32xf32>
    %71 = arith.divf %69, %70 : vector<2x32xf32>
    %72 = vector.extract_strided_slice %55 {offsets = [0, 256], sizes = [2, 32], strides = [1, 1]} : vector<2x288xf32> to vector<2x32xf32>
    %73 = vector.extract_strided_slice %14 {offsets = [0, 512], sizes = [2, 32], strides = [1, 1]} : vector<2x640xf32> to vector<2x32xf32>
    %74 = arith.mulf %63, %73 : vector<2x32xf32>
    %75 = arith.addf %72, %74 : vector<2x32xf32>
    %76 = math.tanh %75 : vector<2x32xf32>
    %cst_23 = arith.constant 1.000000e+00 : f32
    %77 = vector.broadcast %cst_23 : f32 to vector<2x32xf32>
    %78 = arith.subf %77, %71 : vector<2x32xf32>
    %79 = arith.mulf %78, %76 : vector<2x32xf32>
    %80 = arith.mulf %71, %10 : vector<2x32xf32>
    %81 = arith.addf %79, %80 : vector<2x32xf32>
    %c0_24 = arith.constant 0 : index
    %c384 = arith.constant 384 : index
    %82 = vector.load %arg5[%c0_24, %c384] : memref<33x1024xf32, #tpu.memory_space<vmem>>, vector<32x32xf32>
    %cst_25 = arith.constant dense<0.000000e+00> : vector<2x32xf32>
    %83 = tpu.matmul %81, %82, %cst_25 {dimension_numbers = #tpu.dot_dimension_numbers<[1], [0], [0], [1], [0, 0, 1, 1], [], []>} : vector<2x32xf32>, vector<32x32xf32>, vector<2x32xf32> -> vector<2x32xf32>
    %c32_26 = arith.constant 32 : index
    %c384_27 = arith.constant 384 : index
    %84 = vector.load %arg5[%c32_26, %c384_27] : memref<33x1024xf32, #tpu.memory_space<vmem>>, vector<1x32xf32>
    %85 = vector.broadcast %84 : vector<1x32xf32> to vector<2x32xf32>
    %86 = arith.addf %83, %85 : vector<2x32xf32>
    %87 = math.tanh %86 : vector<2x32xf32>
    %c0_28 = arith.constant 0 : index
    %c512 = arith.constant 512 : index
    %88 = vector.load %arg5[%c0_28, %c512] : memref<33x1024xf32, #tpu.memory_space<vmem>>, vector<32x32xf32>
    %cst_29 = arith.constant dense<0.000000e+00> : vector<2x32xf32>
    %89 = tpu.matmul %87, %88, %cst_29 {dimension_numbers = #tpu.dot_dimension_numbers<[1], [0], [0], [1], [0, 0, 1, 1], [], []>} : vector<2x32xf32>, vector<32x32xf32>, vector<2x32xf32> -> vector<2x32xf32>
    %c32_30 = arith.constant 32 : index
    %c512_31 = arith.constant 512 : index
    %90 = vector.load %arg5[%c32_30, %c512_31] : memref<33x1024xf32, #tpu.memory_space<vmem>>, vector<1x32xf32>
    %91 = vector.broadcast %90 : vector<1x32xf32> to vector<2x32xf32>
    %92 = arith.addf %89, %91 : vector<2x32xf32>
    %93 = math.tanh %92 : vector<2x32xf32>
    %c0_32 = arith.constant 0 : index
    %c640 = arith.constant 640 : index
    %94 = vector.load %arg5[%c0_32, %c640] : memref<33x1024xf32, #tpu.memory_space<vmem>>, vector<32x32xf32>
    %cst_33 = arith.constant dense<0.000000e+00> : vector<2x32xf32>
    %95 = tpu.matmul %93, %94, %cst_33 {dimension_numbers = #tpu.dot_dimension_numbers<[1], [0], [0], [1], [0, 0, 1, 1], [], []>} : vector<2x32xf32>, vector<32x32xf32>, vector<2x32xf32> -> vector<2x32xf32>
    %c32_34 = arith.constant 32 : index
    %c640_35 = arith.constant 640 : index
    %96 = vector.load %arg5[%c32_34, %c640_35] : memref<33x1024xf32, #tpu.memory_space<vmem>>, vector<1x32xf32>
    %97 = vector.broadcast %96 : vector<1x32xf32> to vector<2x32xf32>
    %98 = arith.addf %95, %97 : vector<2x32xf32>
    %99 = math.tanh %98 : vector<2x32xf32>
    %c0_36 = arith.constant 0 : index
    %c768 = arith.constant 768 : index
    %100 = vector.load %arg5[%c0_36, %c768] : memref<33x1024xf32, #tpu.memory_space<vmem>>, vector<32x16xf32>
    %cst_37 = arith.constant dense<0.000000e+00> : vector<2x16xf32>
    %101 = tpu.matmul %99, %100, %cst_37 {dimension_numbers = #tpu.dot_dimension_numbers<[1], [0], [0], [1], [0, 0, 1, 1], [], []>} : vector<2x32xf32>, vector<32x16xf32>, vector<2x16xf32> -> vector<2x16xf32>
    %c32_38 = arith.constant 32 : index
    %c768_39 = arith.constant 768 : index
    %102 = vector.load %arg5[%c32_38, %c768_39] : memref<33x1024xf32, #tpu.memory_space<vmem>>, vector<1x16xf32>
    %103 = vector.broadcast %102 : vector<1x16xf32> to vector<2x16xf32>
    %104 = arith.addf %101, %103 : vector<2x16xf32>
    %cst_40 = arith.constant dense<0xFF800000> : vector<2xf32>
    %105 = vector.multi_reduction <maximumf>, %104, %cst_40 [1] : vector<2x16xf32> to vector<2xf32>
    %106 = vector.shape_cast %105 : vector<2xf32> to vector<2x1xf32>
    %107 = vector.broadcast %106 : vector<2x1xf32> to vector<2x16xf32>
    %108 = arith.subf %104, %107 : vector<2x16xf32>
    %109 = math.exp %108 : vector<2x16xf32>
    %cst_41 = arith.constant dense<0.000000e+00> : vector<2xf32>
    %110 = vector.multi_reduction <add>, %109, %cst_41 [1] : vector<2x16xf32> to vector<2xf32>
    %111 = vector.shape_cast %110 : vector<2xf32> to vector<2x1xf32>
    %112 = math.log %111 : vector<2x1xf32>
    %113 = vector.broadcast %112 : vector<2x1xf32> to vector<2x16xf32>
    %114 = arith.subf %108, %113 : vector<2x16xf32>
    %c0_42 = arith.constant 0 : index
    %c0_43 = arith.constant 0 : index
    %115 = vector.load %arg7[%c0_42, %c0_43] : memref<2x32xf32, #tpu.memory_space<vmem>>, vector<2x32xf32>
    tpu.vector_store %arg7[%c0_42, %c0_43], %81 {strides = array<i32>} : memref<2x32xf32, #tpu.memory_space<vmem>>, vector<2x32xf32>,
    %c0_44 = arith.constant 0 : index
    %c0_45 = arith.constant 0 : index
    %c0_46 = arith.constant 0 : index
    %116 = vector.load %arg6[%c0_44, %c0_45, %c0_46] : memref<1x2x384xf32, #tpu.memory_space<vmem>>, vector<1x2x52xf32>
    %117 = vector.shape_cast %116 : vector<1x2x52xf32> to vector<2x52xf32>
    %118 = vector.shape_cast %29 : vector<2x52xf32> to vector<1x2x52xf32>
    tpu.vector_store %arg6[%c0_44, %c0_45, %c0_46], %118 {strides = array<i32>} : memref<1x2x384xf32, #tpu.memory_space<vmem>>, vector<1x2x52xf32>,
    %c0_47 = arith.constant 0 : index
    %c0_48 = arith.constant 0 : index
    %c128 = arith.constant 128 : index
    %119 = vector.load %arg6[%c0_47, %c0_48, %c128] : memref<1x2x384xf32, #tpu.memory_space<vmem>>, vector<1x2x16xf32>
    %120 = vector.shape_cast %119 : vector<1x2x16xf32> to vector<2x16xf32>
    %121 = vector.shape_cast %114 : vector<2x16xf32> to vector<1x2x16xf32>
    tpu.vector_store %arg6[%c0_47, %c0_48, %c128], %121 {strides = array<i32>} : memref<1x2x384xf32, #tpu.memory_space<vmem>>, vector<1x2x16xf32>,
    %c0_49 = arith.constant 0 : index
    %c0_50 = arith.constant 0 : index
    %c256 = arith.constant 256 : index
    %122 = vector.load %arg6[%c0_49, %c0_50, %c256] : memref<1x2x384xf32, #tpu.memory_space<vmem>>, vector<1x2x32xf32>
    %123 = vector.shape_cast %122 : vector<1x2x32xf32> to vector<2x32xf32>
    %124 = vector.shape_cast %81 : vector<2x32xf32> to vector<1x2x32xf32>
    tpu.vector_store %arg6[%c0_49, %c0_50, %c256], %124 {strides = array<i32>} : memref<1x2x384xf32, #tpu.memory_space<vmem>>, vector<1x2x32xf32>,
    return
  }
  func.func @transform_0(%arg0: i32) -> (i32, i32, i32) {
    %c0_i32 = arith.constant 0 : i32
    %c0_i32_0 = arith.constant 0 : i32
    %c0_i32_1 = arith.constant 0 : i32
    return %arg0, %c0_i32, %c0_i32_0 : i32, i32, i32
  }
  func.func @transform_1(%arg0: i32) -> (i32, i32) {
    %c0_i32 = arith.constant 0 : i32
    %c0_i32_0 = arith.constant 0 : i32
    %c0_i32_1 = arith.constant 0 : i32
    return %c0_i32, %c0_i32_0 : i32, i32
  }
  func.func @transform_2(%arg0: i32) -> (i32, i32) {
    %c0_i32 = arith.constant 0 : i32
    %c0_i32_0 = arith.constant 0 : i32
    %c0_i32_1 = arith.constant 0 : i32
    return %c0_i32, %c0_i32_0 : i32, i32
  }
  func.func @transform_3(%arg0: i32) -> (i32, i32) {
    %c0_i32 = arith.constant 0 : i32
    %c0_i32_0 = arith.constant 0 : i32
    %c0_i32_1 = arith.constant 0 : i32
    return %c0_i32, %c0_i32_0 : i32, i32
  }
  func.func @transform_4(%arg0: i32) -> (i32, i32) {
    %c0_i32 = arith.constant 0 : i32
    %c0_i32_0 = arith.constant 0 : i32
    %c0_i32_1 = arith.constant 0 : i32
    return %c0_i32, %c0_i32_0 : i32, i32
  }
  func.func @transform_5(%arg0: i32) -> (i32, i32, i32) {
    %c0_i32 = arith.constant 0 : i32
    %c0_i32_0 = arith.constant 0 : i32
    %c0_i32_1 = arith.constant 0 : i32
    return %arg0, %c0_i32, %c0_i32_0 : i32, i32, i32
  }
}

</mosaic_0001>

<llo_original>
// kernel: batch_attn_decoder_forward.1
$region0: #{batch_attn_decoder_forward.1}
  #allocation0 [shape = 'u32[]', space=smem, size = 0x4, offset = 0x4, fixed_abs, tag = 'smem constant byte address 0x4 - core index']
  #allocation1 [shape = 'u32[144,128]{1,0:T(1,128)}', space=vmem, size = 0x12000, scoped, tag = 'internal scratch']
  #allocation2 [shape = 'f32[2,32]{1,0:T(2,128)}', space=vmem, size = 0x400, scoped, tag = 'scratch operand']
  #allocation3 [shape = 'f32[104,32]{1,0:T(8,128)}', space=vmem, size = 0xd000, scoped, tag = 'scratch operand']
  %s0 = inlined_call_operand.vmem [shape: s32[1,2,1], index: 0, kind: input, shape index: {}]
  %s1 = inlined_call_operand.vmem [shape: f32[2,32], index: 1, kind: input, shape index: {}]
  %s2 = inlined_call_operand.vmem [shape: f32[104,32], index: 2, kind: input, shape index: {}]
  %s3 = inlined_call_operand.hbm [shape: f32[49,640], index: 3, kind: input, shape index: {}]
  %s4 = inlined_call_operand.vmem [shape: f32[33,1024], index: 4, kind: input, shape index: {}]
  %s5 = inlined_call_operand.vmem [shape: f32[1,2,384], index: 5, kind: output, shape index: {}]
  %s6 = sld [smem:[#allocation0]]
  $region38: #{batch_attn_decoder_forward.1} parent=0
    _
  %s8 = ssub.s32 1, %s6
  %s9 = scalar_select 0, %s8, %s6
  $region1: #{batch_attn_decoder_forward.1} parent=0
    #allocation4 [shape = 'u8[143360]{0}', space=vmem, size = 0x23000, scoped, tag = 'input window, operand 3, single buffered']
    #allocation5 [shape = 's32[1]{0}', space=sflag, size = 0x4, scoped, tag = 'scoped memory for batch_attn_decoder_forward.1']
    %10 = vsyncpa [#allocation5], 0
    // Predicated region
    $region2: #{batch_attn_decoder_forward.1} parent=1 // pred_check
      _
    $region3: #{batch_attn_decoder_forward.1} parent=1 // pred_check_branch
      %12 = sbr.rel (0) target = $region5
    $region4: #{batch_attn_decoder_forward.1} parent=1 // pred_region
      _
    $region5: #{batch_attn_decoder_forward.1} parent=1 // pred_fallthru
      _
    // Predicated region
    $region6: #{batch_attn_decoder_forward.1} parent=1 // pred_check
      _
    $region7: #{batch_attn_decoder_forward.1} parent=1 // pred_check_branch
      %14 = sbr.rel (0) target = $region9
    $region8: #{batch_attn_decoder_forward.1} parent=1 // pred_region
      _
    $region9: #{batch_attn_decoder_forward.1} parent=1 // pred_fallthru
      _
    // Predicated region
    $region10: #{batch_attn_decoder_forward.1} parent=1 // pred_check
      _
    $region11: #{batch_attn_decoder_forward.1} parent=1 // pred_check_branch
      %16 = sbr.rel (0) target = $region13
    $region12: #{batch_attn_decoder_forward.1} parent=1 // pred_region
      _
    $region13: #{batch_attn_decoder_forward.1} parent=1 // pred_fallthru
      _
    // Predicated region
    $region14: #{batch_attn_decoder_forward.1} parent=1 // pred_check
      _
    $region15: #{batch_attn_decoder_forward.1} parent=1 // pred_check_branch
      %18 = sbr.rel (0) target = $region17
    $region16: #{batch_attn_decoder_forward.1} parent=1 // pred_region
      %s20 = ssub.s32 4480, 4480
      %21 = vsyncadd [#allocation5], %s20
      %s22 = sshll.u32 [#allocation4], 4
      %s23 = int_to_ptr.vmem [resolvable:$true] %s22
      %28 = dma.hbm_to_vmem [thread:$0]  %s3, 4480, %s23, [#allocation5], 640, 640, 40
    $region17: #{batch_attn_decoder_forward.1} parent=1 // pred_fallthru
      _
    // Predicated region
    $region18: #{batch_attn_decoder_forward.1} parent=1 // pred_check
      _
    $region19: #{batch_attn_decoder_forward.1} parent=1 // pred_check_branch
      %30 = sbr.rel (0) target = $region21
    $region20: #{batch_attn_decoder_forward.1} parent=1 // pred_region
      _
    $region21: #{batch_attn_decoder_forward.1} parent=1 // pred_fallthru
      _
    // Predicated region
    $region22: #{batch_attn_decoder_forward.1} parent=1 // pred_check
      _
    $region23: #{batch_attn_decoder_forward.1} parent=1 // pred_check_branch
      %32 = sbr.rel (0) target = $region25
    $region24: #{batch_attn_decoder_forward.1} parent=1 // pred_region
      %33 = dma.done [#allocation5], 4480
    $region25: #{batch_attn_decoder_forward.1} parent=1 // pred_fallthru
      _
    %p34 = scmp.eq.s32.totalorder 0, 0
    // Predicated region
    $region26: #{batch_attn_decoder_forward.1} parent=1 // pred_check
      %p35 = pneg %p34
    $region27: #{batch_attn_decoder_forward.1} parent=1 // pred_check_branch
      %37 = sbr.rel (%p35) target = $region29
    $region28: #{batch_attn_decoder_forward.1} parent=1 // pred_region
      %v38 = vld [vmem:[%s1] sm:$0x3]
      %vm39 = vcmask 254976
      %40 = vst.msk [vmem:[#allocation2] sm:$0x3] %vm39, %v38
      %v41 = vld [vmem:[%s2] sm:$0xff]
      %v42 = vld [vmem:[%s2 + $0x8] sm:$0xff]
      %v43 = vld [vmem:[%s2 + $0x10] sm:$0xff]
      %v44 = vld [vmem:[%s2 + $0x18] sm:$0xff]
      %v45 = vld [vmem:[%s2 + $0x20] sm:$0xff]
      %v46 = vld [vmem:[%s2 + $0x28] sm:$0xff]
      %v47 = vld [vmem:[%s2 + $0x30] sm:$0xff]
      %v48 = vld [vmem:[%s2 + $0x38] sm:$0xff]
      %v49 = vld [vmem:[%s2 + $0x40] sm:$0xff]
      %v50 = vld [vmem:[%s2 + $0x48] sm:$0xff]
      %v51 = vld [vmem:[%s2 + $0x50] sm:$0xff]
      %v52 = vld [vmem:[%s2 + $0x58] sm:$0xff]
      %v53 = vld [vmem:[%s2 + $0x60] sm:$0xff]
      %v54 = vld [vmem:[%s4 + $0x38] sm:$0xff]
      %v55 = vld [vmem:[%s4 + $0x78] sm:$0xff]
      %v56 = vld [vmem:[%s4 + $0xb8] sm:$0xff]
      %v57 = vld [vmem:[%s4 + $0xf8] sm:$0xff]
      %vm58 = vcmask 261120
      %v60 = vsel %vm58, %v41, 0
      %v63 = vsel %vm58, %v42, 0
      %v66 = vsel %vm58, %v43, 0
      %v69 = vsel %vm58, %v44, 0
      %v72 = vsel %vm58, %v45, 0
      %v75 = vsel %vm58, %v46, 0
      %v78 = vsel %vm58, %v47, 0
      %v81 = vsel %vm58, %v48, 0
      %v84 = vsel %vm58, %v49, 0
      %v87 = vsel %vm58, %v50, 0
      %v90 = vsel %vm58, %v51, 0
      %v93 = vsel %vm58, %v52, 0
      %v96 = vsel %vm58, %v53, 0
      %98 = vmatprep.subr.mxu0 0.0
      %99 = vmatpush1.msra.mxu0 0.0
      %100 = vmatprep.subr.mxu0 0.0
      %101 = vmatpush1.msra.mxu0 0.0
      %102 = vmatprep.subr.mxu0 0.0
      %103 = vmatpush1.msra.mxu0 0.0
      %104 = vmatprep.subr.mxu0 0.0
      %105 = vmatpush1.msra.mxu0 0.0
      %106 = vmatprep.subr.mxu0 0.0
      %107 = vmatpush1.msra.mxu0 0.0
      %108 = vmatprep.subr.mxu0 0.0
      %109 = vmatpush1.msra.mxu0 0.0
      %110 = vmatprep.subr.mxu0 0.0
      %111 = vmatpush1.msra.mxu0 0.0
      %112 = vmatprep.subr.mxu0 0.0
      %113 = vmatpush1.msra.mxu0 0.0
      %114 = vmatprep.subr.mxu0 0.0
      %115 = vmatpush1.msra.mxu0 0.0
      %116 = vmatprep.subr.mxu0 0.0
      %117 = vmatpush1.msra.mxu0 0.0
      %118 = vmatprep.subr.mxu0 0.0
      %119 = vmatpush1.msra.mxu0 0.0
      %120 = vmatprep.subr.mxu0 0.0
      %121 = vmatpush1.msra.mxu0 0.0
      %122 = vmatprep.subr.mxu0 0.0
      %123 = vmatpush1.msra.mxu0 %v57
      %124 = vmatprep.subr.mxu0 0.0
      %125 = vmatpush1.msra.mxu0 %v56
      %126 = vmatprep.subr.mxu0 0.0
      %127 = vmatpush1.msra.mxu0 %v55
      %128 = vmatprep.subr.mxu0 0.0
      %129 = vmatpush1.msra.mxu0 %v54
      %130 = vmatprep.subr.mxu0 0.0
      %131 = vmatpush2.msra.mxu0 0.0
      %132 = vmatprep.subr.mxu0 0.0
      %133 = vmatpush2.msra.mxu0 0.0
      %134 = vmatprep.subr.mxu0 0.0
      %135 = vmatpush2.msra.mxu0 0.0
      %136 = vmatprep.subr.mxu0 0.0
      %137 = vmatpush2.msra.mxu0 0.0
      %138 = vmatprep.subr.mxu0 0.0
      %139 = vmatpush2.msra.mxu0 0.0
      %140 = vmatprep.subr.mxu0 0.0
      %141 = vmatpush2.msra.mxu0 0.0
      %142 = vmatprep.subr.mxu0 0.0
      %143 = vmatpush2.msra.mxu0 0.0
      %144 = vmatprep.subr.mxu0 0.0
      %145 = vmatpush2.msra.mxu0 0.0
      %146 = vmatprep.subr.mxu0 0.0
      %147 = vmatpush2.msra.mxu0 0.0
      %148 = vmatprep.subr.mxu0 0.0
      %149 = vmatpush2.msra.mxu0 0.0
      %150 = vmatprep.subr.mxu0 0.0
      %151 = vmatpush2.msra.mxu0 0.0
      %152 = vmatprep.subr.mxu0 0.0
      %153 = vmatpush2.msra.mxu0 0.0
      %154 = vmatprep.subr.mxu0 0.0
      %155 = vmatpush2.msra.mxu0 0.0
      %156 = vmatprep.subr.mxu0 0.0
      %157 = vmatpush2.msra.mxu0 0.0
      %158 = vmatprep.subr.mxu0 0.0
      %159 = vmatpush2.msra.mxu0 0.0
      %160 = vmatprep.subr.mxu0 0.0
      %161 = vmatpush2.msra.mxu0 0.0
      %162 = vmatprep.mubr.f32.mxu0 0.0
      %163 = vmatmul.mubr.f32.gmra.mxu0 %v60
      %v164 = vpop.f32.mrf.mxu0
      %v165 = vadd.f32 0.0, %v164
      %v166 = vpop.f32.mrf.mxu0
      %167 = vmatprep.mubr.f32.mxu0 0.0
      %168 = vmatmul.mubr.f32.gmra.mxu0 %v63
      %v169 = vpop.f32.mrf.mxu0
      %v170 = vadd.f32 0.0, %v169
      %v171 = vpop.f32.mrf.mxu0
      %172 = vmatprep.mubr.f32.mxu0 0.0
      %173 = vmatmul.mubr.f32.gmra.mxu0 %v66
      %v174 = vpop.f32.mrf.mxu0
      %v175 = vadd.f32 0.0, %v174
      %v176 = vpop.f32.mrf.mxu0
      %177 = vmatprep.mubr.f32.mxu0 0.0
      %178 = vmatmul.mubr.f32.gmra.mxu0 %v69
      %v179 = vpop.f32.mrf.mxu0
      %v180 = vadd.f32 0.0, %v179
      %v181 = vpop.f32.mrf.mxu0
      %182 = vmatprep.mubr.f32.mxu0 0.0
      %183 = vmatmul.mubr.f32.gmra.mxu0 %v72
      %v184 = vpop.f32.mrf.mxu0
      %v185 = vadd.f32 0.0, %v184
      %v186 = vpop.f32.mrf.mxu0
      %187 = vmatprep.mubr.f32.mxu0 0.0
      %188 = vmatmul.mubr.f32.gmra.mxu0 %v75
      %v189 = vpop.f32.mrf.mxu0
      %v190 = vadd.f32 0.0, %v189
      %v191 = vpop.f32.mrf.mxu0
      %192 = vmatprep.mubr.f32.mxu0 0.0
      %193 = vmatmul.mubr.f32.gmra.mxu0 %v78
      %v194 = vpop.f32.mrf.mxu0
      %v195 = vadd.f32 0.0, %v194
      %v196 = vpop.f32.mrf.mxu0
      %197 = vmatprep.mubr.f32.mxu0 0.0
      %198 = vmatmul.mubr.f32.gmra.mxu0 %v81
      %v199 = vpop.f32.mrf.mxu0
      %v200 = vadd.f32 0.0, %v199
      %v201 = vpop.f32.mrf.mxu0
      %202 = vmatprep.mubr.f32.mxu0 0.0
      %203 = vmatmul.mubr.f32.gmra.mxu0 %v84
      %v204 = vpop.f32.mrf.mxu0
      %v205 = vadd.f32 0.0, %v204
      %v206 = vpop.f32.mrf.mxu0
      %207 = vmatprep.mubr.f32.mxu0 0.0
      %208 = vmatmul.mubr.f32.gmra.mxu0 %v87
      %v209 = vpop.f32.mrf.mxu0
      %v210 = vadd.f32 0.0, %v209
      %v211 = vpop.f32.mrf.mxu0
      %212 = vmatprep.mubr.f32.mxu0 0.0
      %213 = vmatmul.mubr.f32.gmra.mxu0 %v90
      %v214 = vpop.f32.mrf.mxu0
      %v215 = vadd.f32 0.0, %v214
      %v216 = vpop.f32.mrf.mxu0
      %217 = vmatprep.mubr.f32.mxu0 0.0
      %218 = vmatmul.mubr.f32.gmra.mxu0 %v93
      %v219 = vpop.f32.mrf.mxu0
      %v220 = vadd.f32 0.0, %v219
      %v221 = vpop.f32.mrf.mxu0
      %222 = vmatprep.mubr.f32.mxu0 0.0
      %223 = vmatmul.mubr.f32.gmra.mxu0 %v96
      %v224 = vpop.f32.mrf.mxu0
      %v225 = vadd.f32 0.0, %v224
      %v226 = vpop.f32.mrf.mxu0
      %227 = vdwg.mxu0
      %228 = vst.msk [vmem:[#allocation3] sm:$0xff] %vm58, %v165
      %229 = vst.msk [vmem:[#allocation3 + $0x8] sm:$0xff] %vm58, %v170
      %230 = vst.msk [vmem:[#allocation3 + $0x10] sm:$0xff] %vm58, %v175
      %231 = vst.msk [vmem:[#allocation3 + $0x18] sm:$0xff] %vm58, %v180
      %232 = vst.msk [vmem:[#allocation3 + $0x20] sm:$0xff] %vm58, %v185
      %233 = vst.msk [vmem:[#allocation3 + $0x28] sm:$0xff] %vm58, %v190
      %234 = vst.msk [vmem:[#allocation3 + $0x30] sm:$0xff] %vm58, %v195
      %235 = vst.msk [vmem:[#allocation3 + $0x38] sm:$0xff] %vm58, %v200
      %236 = vst.msk [vmem:[#allocation3 + $0x40] sm:$0xff] %vm58, %v205
      %237 = vst.msk [vmem:[#allocation3 + $0x48] sm:$0xff] %vm58, %v210
      %238 = vst.msk [vmem:[#allocation3 + $0x50] sm:$0xff] %vm58, %v215
      %239 = vst.msk [vmem:[#allocation3 + $0x58] sm:$0xff] %vm58, %v220
      %240 = vst.msk [vmem:[#allocation3 + $0x60] sm:$0xff] %vm58, %v225
    $region29: #{batch_attn_decoder_forward.1} parent=1 // pred_fallthru
      _
    %v241 = vld [vmem:[%s0] sm:$0x3]
    %v242 = vlaneseq
    %v243 = vand.u32 %v242, 127
    %244 = vset.pattern.permute.xlu0 0
    %245 = vperm.xlu0 %244, %v241
    %v246 = vpop.permute.xlu0 %245
    %vm247 = vcmp.eq.s32.totalorder %v243, %v246
    %v248 = vsel %vm247, 1, 0
    %v249 = vcvt.s32.f32 %v248
    %v250 = vld [vmem:[#allocation2] sm:$0x3]
    %252 = vrot.lane.b32.xlu0 %v250, 16
    %v253 = vpop.permute.xlu0 %252
    %vm255 = vcmask 130048
    %v256 = vsel %vm255, %v249, %v253
    %vm257 = vcmask 392192
    %v258 = vsel %vm257, %v256, 1.0
    %v259 = vld [vmem:[#allocation4] sm:$0xff]
    %v260 = vld [vmem:[#allocation4 + $0x8] sm:$0xff]
    %v261 = vld [vmem:[#allocation4 + $0x10] sm:$0xff]
    %v262 = vld [vmem:[#allocation4 + $0x18] sm:$0xff]
    %v263 = vld [vmem:[#allocation4 + $0x20] sm:$0xff]
    %v264 = vld [vmem:[#allocation4 + $0x28] sm:$0xff]
    %v265 = vld [vmem:[#allocation4 + $0x30] sm:$0xff]
    %v266 = vld [vmem:[#allocation4 + $0x38] sm:$0xff]
    %v267 = vld [vmem:[#allocation4 + $0x40] sm:$0xff]
    %v268 = vld [vmem:[#allocation4 + $0x48] sm:$0xff]
    %v269 = vld [vmem:[#allocation4 + $0x50] sm:$0xff]
    %v270 = vld [vmem:[#allocation4 + $0x58] sm:$0xff]
    %v271 = vld [vmem:[#allocation4 + $0x60] sm:$0xff]
    %v272 = vld [vmem:[#allocation4 + $0x68] sm:$0xff]
    %v273 = vld [vmem:[#allocation4 + $0x70] sm:$0xff]
    %v274 = vld [vmem:[#allocation4 + $0x78] sm:$0xff]
    %v275 = vld [vmem:[#allocation4 + $0x80] sm:$0xff]
    %v276 = vld [vmem:[#allocation4 + $0x88] sm:$0xff]
    %v277 = vld [vmem:[#allocation4 + $0x90] sm:$0xff]
    %v278 = vld [vmem:[#allocation4 + $0x98] sm:$0xff]
    %v279 = vld [vmem:[#allocation4 + $0xa0] sm:$0xff]
    %v280 = vld [vmem:[#allocation4 + $0xa8] sm:$0xff]
    %v281 = vld [vmem:[#allocation4 + $0xb0] sm:$0xff]
    %v282 = vld [vmem:[#allocation4 + $0xb8] sm:$0xff]
    %v283 = vld [vmem:[#allocation4 + $0xc0] sm:$0xff]
    %v284 = vld [vmem:[#allocation4 + $0xc8] sm:$0xff]
    %v285 = vld [vmem:[#allocation4 + $0xd0] sm:$0xff]
    %v286 = vld [vmem:[#allocation4 + $0xd8] sm:$0xff]
    %v287 = vld [vmem:[#allocation4 + $0xe0] sm:$0xff]
    %v288 = vld [vmem:[#allocation4 + $0xe8] sm:$0xff]
    %v289 = vld [vmem:[#allocation4 + $0xf0] sm:$0x1]
    %v290 = vld [vmem:[#allocation4 + $0xf8] sm:$0x1]
    %v291 = vld [vmem:[#allocation4 + $0x100] sm:$0x1]
    %v292 = vld [vmem:[#allocation4 + $0x108] sm:$0x1]
    %v293 = vld [vmem:[#allocation4 + $0x110] sm:$0x1]
    %vm294 = vcmask 400384
    %v296 = vsel %vm294, %v258, 0
    %vm298 = vcmask 1040384
    %v300 = vsel %vm298, %v289, 0
    %v303 = vsel %vm298, %v290, 0
    %v306 = vsel %vm298, %v291, 0
    %v309 = vsel %vm298, %v292, 0
    %v312 = vsel %vm298, %v293, 0
    %314 = vmatprep.subr.mxu0 0.0
    %315 = vmatpush1.msra.mxu0 0.0
    %316 = vmatprep.subr.mxu0 0.0
    %317 = vmatpush1.msra.mxu0 0.0
    %318 = vmatprep.subr.mxu0 0.0
    %319 = vmatpush1.msra.mxu0 0.0
    %320 = vmatprep.subr.mxu0 0.0
    %321 = vmatpush1.msra.mxu0 0.0
    %322 = vmatprep.subr.mxu0 0.0
    %323 = vmatpush1.msra.mxu0 0.0
    %324 = vmatprep.subr.mxu0 0.0
    %325 = vmatpush1.msra.mxu0 0.0
    %326 = vmatprep.subr.mxu0 0.0
    %327 = vmatpush1.msra.mxu0 0.0
    %328 = vmatprep.subr.mxu0 0.0
    %329 = vmatpush1.msra.mxu0 0.0
    %330 = vmatprep.subr.mxu0 0.0
    %331 = vmatpush1.msra.mxu0 0.0
    %332 = vmatprep.subr.mxu0 %v303
    %333 = vmatpush1.msra.mxu0 %v300
    %334 = vmatprep.subr.mxu0 %v285
    %335 = vmatpush1.msra.mxu0 %v284
    %336 = vmatprep.subr.mxu0 %v280
    %337 = vmatpush1.msra.mxu0 %v279
    %338 = vmatprep.subr.mxu0 %v275
    %339 = vmatpush1.msra.mxu0 %v274
    %340 = vmatprep.subr.mxu0 %v270
    %341 = vmatpush1.msra.mxu0 %v269
    %342 = vmatprep.subr.mxu0 %v265
    %343 = vmatpush1.msra.mxu0 %v264
    %344 = vmatprep.subr.mxu0 %v260
    %345 = vmatpush1.msra.mxu0 %v259
    %346 = vmatprep.subr.mxu0 0.0
    %347 = vmatpush2.msra.mxu0 0.0
    %348 = vmatprep.subr.mxu0 0.0
    %349 = vmatpush2.msra.mxu0 0.0
    %350 = vmatprep.subr.mxu0 0.0
    %351 = vmatpush2.msra.mxu0 0.0
    %352 = vmatprep.subr.mxu0 0.0
    %353 = vmatpush2.msra.mxu0 0.0
    %354 = vmatprep.subr.mxu0 0.0
    %355 = vmatpush2.msra.mxu0 0.0
    %356 = vmatprep.subr.mxu0 0.0
    %357 = vmatpush2.msra.mxu0 0.0
    %358 = vmatprep.subr.mxu0 0.0
    %359 = vmatpush2.msra.mxu0 0.0
    %360 = vmatprep.subr.mxu0 0.0
    %361 = vmatpush2.msra.mxu0 0.0
    %362 = vmatprep.subr.mxu0 0.0
    %363 = vmatpush2.msra.mxu0 0.0
    %364 = vmatprep.subr.mxu0 0.0
    %365 = vmatpush2.msra.mxu0 0.0
    %366 = vmatprep.subr.mxu0 0.0
    %367 = vmatpush2.msra.mxu0 0.0
    %368 = vmatprep.subr.mxu0 0.0
    %369 = vmatpush2.msra.mxu0 0.0
    %370 = vmatprep.subr.mxu0 0.0
    %371 = vmatpush2.msra.mxu0 0.0
    %372 = vmatprep.subr.mxu0 0.0
    %373 = vmatpush2.msra.mxu0 0.0
    %374 = vmatprep.subr.mxu0 0.0
    %375 = vmatpush2.msra.mxu0 0.0
    %376 = vmatprep.subr.mxu0 0.0
    %377 = vmatpush2.msra.mxu0 0.0
    %378 = vmatprep.mubr.f32.mxu0 0.0
    %379 = vmatmul.mubr.f32.gmra.mxu0 %v296
    %v380 = vpop.f32.mrf.mxu0
    %v381 = vadd.f32 0.0, %v380
    %v382 = vpop.f32.mrf.mxu0
    %v383 = vadd.f32 0.0, %v382
    %384 = vdwg.mxu0
    %385 = vmatprep.subr.mxu0 0.0
    %386 = vmatpush1.msra.mxu0 0.0
    %387 = vmatprep.subr.mxu0 0.0
    %388 = vmatpush1.msra.mxu0 0.0
    %389 = vmatprep.subr.mxu0 0.0
    %390 = vmatpush1.msra.mxu0 0.0
    %391 = vmatprep.subr.mxu0 0.0
    %392 = vmatpush1.msra.mxu0 0.0
    %393 = vmatprep.subr.mxu0 0.0
    %394 = vmatpush1.msra.mxu0 0.0
    %395 = vmatprep.subr.mxu0 0.0
    %396 = vmatpush1.msra.mxu0 0.0
    %397 = vmatprep.subr.mxu0 0.0
    %398 = vmatpush1.msra.mxu0 0.0
    %399 = vmatprep.subr.mxu0 0.0
    %400 = vmatpush1.msra.mxu0 0.0
    %401 = vmatprep.subr.mxu0 0.0
    %402 = vmatpush1.msra.mxu0 0.0
    %403 = vmatprep.subr.mxu0 %v309
    %404 = vmatpush1.msra.mxu0 %v306
    %405 = vmatprep.subr.mxu0 %v287
    %406 = vmatpush1.msra.mxu0 %v286
    %407 = vmatprep.subr.mxu0 %v282
    %408 = vmatpush1.msra.mxu0 %v281
    %409 = vmatprep.subr.mxu0 %v277
    %410 = vmatpush1.msra.mxu0 %v276
    %411 = vmatprep.subr.mxu0 %v272
    %412 = vmatpush1.msra.mxu0 %v271
    %413 = vmatprep.subr.mxu0 %v267
    %414 = vmatpush1.msra.mxu0 %v266
    %415 = vmatprep.subr.mxu0 %v262
    %416 = vmatpush1.msra.mxu0 %v261
    %417 = vmatprep.subr.mxu0 0.0
    %418 = vmatpush2.msra.mxu0 0.0
    %419 = vmatprep.subr.mxu0 0.0
    %420 = vmatpush2.msra.mxu0 0.0
    %421 = vmatprep.subr.mxu0 0.0
    %422 = vmatpush2.msra.mxu0 0.0
    %423 = vmatprep.subr.mxu0 0.0
    %424 = vmatpush2.msra.mxu0 0.0
    %425 = vmatprep.subr.mxu0 0.0
    %426 = vmatpush2.msra.mxu0 0.0
    %427 = vmatprep.subr.mxu0 0.0
    %428 = vmatpush2.msra.mxu0 0.0
    %429 = vmatprep.subr.mxu0 0.0
    %430 = vmatpush2.msra.mxu0 0.0
    %431 = vmatprep.subr.mxu0 0.0
    %432 = vmatpush2.msra.mxu0 0.0
    %433 = vmatprep.subr.mxu0 0.0
    %434 = vmatpush2.msra.mxu0 0.0
    %435 = vmatprep.subr.mxu0 0.0
    %436 = vmatpush2.msra.mxu0 0.0
    %437 = vmatprep.subr.mxu0 0.0
    %438 = vmatpush2.msra.mxu0 0.0
    %439 = vmatprep.subr.mxu0 0.0
    %440 = vmatpush2.msra.mxu0 0.0
    %441 = vmatprep.subr.mxu0 0.0
    %442 = vmatpush2.msra.mxu0 0.0
    %443 = vmatprep.subr.mxu0 0.0
    %444 = vmatpush2.msra.mxu0 0.0
    %445 = vmatprep.subr.mxu0 0.0
    %446 = vmatpush2.msra.mxu0 0.0
    %447 = vmatprep.subr.mxu0 0.0
    %448 = vmatpush2.msra.mxu0 0.0
    %449 = vmatprep.mubr.f32.mxu0 0.0
    %450 = vmatmul.mubr.f32.gmra.mxu0 %v296
    %v451 = vpop.f32.mrf.mxu0
    %v452 = vadd.f32 0.0, %v451
    %v453 = vpop.f32.mrf.mxu0
    %v454 = vadd.f32 0.0, %v453
    %455 = vdwg.mxu0
    %456 = vmatprep.subr.mxu0 0.0
    %457 = vmatpush1.msra.mxu0 0.0
    %458 = vmatprep.subr.mxu0 0.0
    %459 = vmatpush1.msra.mxu0 0.0
    %460 = vmatprep.subr.mxu0 0.0
    %461 = vmatpush1.msra.mxu0 0.0
    %462 = vmatprep.subr.mxu0 0.0
    %463 = vmatpush1.msra.mxu0 0.0
    %464 = vmatprep.subr.mxu0 0.0
    %465 = vmatpush1.msra.mxu0 0.0
    %466 = vmatprep.subr.mxu0 0.0
    %467 = vmatpush1.msra.mxu0 0.0
    %468 = vmatprep.subr.mxu0 0.0
    %469 = vmatpush1.msra.mxu0 0.0
    %470 = vmatprep.subr.mxu0 0.0
    %471 = vmatpush1.msra.mxu0 0.0
    %472 = vmatprep.subr.mxu0 0.0
    %473 = vmatpush1.msra.mxu0 0.0
    %474 = vmatprep.subr.mxu0 0.0
    %475 = vmatpush1.msra.mxu0 %v312
    %476 = vmatprep.subr.mxu0 0.0
    %477 = vmatpush1.msra.mxu0 %v288
    %478 = vmatprep.subr.mxu0 0.0
    %479 = vmatpush1.msra.mxu0 %v283
    %480 = vmatprep.subr.mxu0 0.0
    %481 = vmatpush1.msra.mxu0 %v278
    %482 = vmatprep.subr.mxu0 0.0
    %483 = vmatpush1.msra.mxu0 %v273
    %484 = vmatprep.subr.mxu0 0.0
    %485 = vmatpush1.msra.mxu0 %v268
    %486 = vmatprep.subr.mxu0 0.0
    %487 = vmatpush1.msra.mxu0 %v263
    %488 = vmatprep.subr.mxu0 0.0
    %489 = vmatpush2.msra.mxu0 0.0
    %490 = vmatprep.subr.mxu0 0.0
    %491 = vmatpush2.msra.mxu0 0.0
    %492 = vmatprep.subr.mxu0 0.0
    %493 = vmatpush2.msra.mxu0 0.0
    %494 = vmatprep.subr.mxu0 0.0
    %495 = vmatpush2.msra.mxu0 0.0
    %496 = vmatprep.subr.mxu0 0.0
    %497 = vmatpush2.msra.mxu0 0.0
    %498 = vmatprep.subr.mxu0 0.0
    %499 = vmatpush2.msra.mxu0 0.0
    %500 = vmatprep.subr.mxu0 0.0
    %501 = vmatpush2.msra.mxu0 0.0
    %502 = vmatprep.subr.mxu0 0.0
    %503 = vmatpush2.msra.mxu0 0.0
    %504 = vmatprep.subr.mxu0 0.0
    %505 = vmatpush2.msra.mxu0 0.0
    %506 = vmatprep.subr.mxu0 0.0
    %507 = vmatpush2.msra.mxu0 0.0
    %508 = vmatprep.subr.mxu0 0.0
    %509 = vmatpush2.msra.mxu0 0.0
    %510 = vmatprep.subr.mxu0 0.0
    %511 = vmatpush2.msra.mxu0 0.0
    %512 = vmatprep.subr.mxu0 0.0
    %513 = vmatpush2.msra.mxu0 0.0
    %514 = vmatprep.subr.mxu0 0.0
    %515 = vmatpush2.msra.mxu0 0.0
    %516 = vmatprep.subr.mxu0 0.0
    %517 = vmatpush2.msra.mxu0 0.0
    %518 = vmatprep.subr.mxu0 0.0
    %519 = vmatpush2.msra.mxu0 0.0
    %520 = vmatprep.mubr.f32.mxu0 0.0
    %521 = vmatmul.mubr.f32.gmra.mxu0 %v296
    %v522 = vpop.f32.mrf.mxu0
    %v523 = vadd.f32 0.0, %v522
    %v524 = vpop.f32.mrf.mxu0
    %525 = vdwg.mxu0
    %vm526 = vcmask 418816
    %v527 = vsel %vm526, %v381, -inf
    %528 = vmax.xlane.f32.xlu0 %v527
    %v529 = vpop.xlane.xlu0 %528
    %v530 = vsub.f32 %v381, %v529
    %v531 = vmul.f32 %v530, 1.442695
    %v532 = vpow.pop %v531
    %v533 = vsel %vm526, %v532, 0.0
    %534 = vadd.xlane.f32.xlu0 %v533
    %v535 = vpop.xlane.xlu0 %534
    %v536 = vrcp.pop %v535
    %v537 = vmul.f32 1.0, %v536
    %v538 = vmul.f32 %v532, %v537
    %v539 = vlaneseq
    %v540 = vshrl.u32 %v539, 7
    %v541 = vmul.u32 %v540, 52
    %vm542 = vcmp.ge.s32.totalorder %v243, %v541
    %v543 = vadd.s32 %v540, 1
    %v544 = vmul.u32 %v543, 52
    %vm545 = vcmp.lt.s32.totalorder %v243, %v544
    %vm546 = vmand %vm542, %vm545
    %v547 = vsel %vm546, %v532, 0.0
    %v548 = vld [vmem:[#allocation3] sm:$0xff]
    %v549 = vld [vmem:[#allocation3 + $0x8] sm:$0xff]
    %v550 = vld [vmem:[#allocation3 + $0x10] sm:$0xff]
    %v551 = vld [vmem:[#allocation3 + $0x18] sm:$0xff]
    %v552 = vld [vmem:[#allocation3 + $0x20] sm:$0xff]
    %v553 = vld [vmem:[#allocation3 + $0x28] sm:$0xff]
    %v554 = vld [vmem:[#allocation3 + $0x30] sm:$0xff]
    %v555 = vld [vmem:[#allocation3 + $0x38] sm:$0xff]
    %v556 = vld [vmem:[#allocation3 + $0x40] sm:$0xff]
    %v557 = vld [vmem:[#allocation3 + $0x48] sm:$0xff]
    %v558 = vld [vmem:[#allocation3 + $0x50] sm:$0xff]
    %v559 = vld [vmem:[#allocation3 + $0x58] sm:$0xff]
    %v560 = vld [vmem:[#allocation3 + $0x60] sm:$0xff]
    %vm561 = vcmask 850944
    %v563 = vsel %vm561, %v547, 0
    %565 = vmatprep.subr.mxu0 0.0
    %566 = vmatpush1.msra.mxu0 0.0
    %567 = vmatprep.subr.mxu0 0.0
    %568 = vmatpush1.msra.mxu0 0.0
    %569 = vmatprep.subr.mxu0 0.0
    %570 = vmatpush1.msra.mxu0 0.0
    %571 = vmatprep.subr.mxu0 0.0
    %572 = vmatpush1.msra.mxu0 %v560
    %573 = vmatprep.subr.mxu0 0.0
    %574 = vmatpush1.msra.mxu0 %v559
    %575 = vmatprep.subr.mxu0 0.0
    %576 = vmatpush1.msra.mxu0 %v558
    %577 = vmatprep.subr.mxu0 0.0
    %578 = vmatpush1.msra.mxu0 %v557
    %579 = vmatprep.subr.mxu0 0.0
    %580 = vmatpush1.msra.mxu0 %v556
    %581 = vmatprep.subr.mxu0 0.0
    %582 = vmatpush1.msra.mxu0 %v555
    %583 = vmatprep.subr.mxu0 0.0
    %584 = vmatpush1.msra.mxu0 %v554
    %585 = vmatprep.subr.mxu0 0.0
    %586 = vmatpush1.msra.mxu0 %v553
    %587 = vmatprep.subr.mxu0 0.0
    %588 = vmatpush1.msra.mxu0 %v552
    %589 = vmatprep.subr.mxu0 0.0
    %590 = vmatpush1.msra.mxu0 %v551
    %591 = vmatprep.subr.mxu0 0.0
    %592 = vmatpush1.msra.mxu0 %v550
    %593 = vmatprep.subr.mxu0 0.0
    %594 = vmatpush1.msra.mxu0 %v549
    %595 = vmatprep.subr.mxu0 0.0
    %596 = vmatpush1.msra.mxu0 %v548
    %597 = vmatprep.subr.mxu0 0.0
    %598 = vmatpush2.msra.mxu0 0.0
    %599 = vmatprep.subr.mxu0 0.0
    %600 = vmatpush2.msra.mxu0 0.0
    %601 = vmatprep.subr.mxu0 0.0
    %602 = vmatpush2.msra.mxu0 0.0
    %603 = vmatprep.subr.mxu0 0.0
    %604 = vmatpush2.msra.mxu0 0.0
    %605 = vmatprep.subr.mxu0 0.0
    %606 = vmatpush2.msra.mxu0 0.0
    %607 = vmatprep.subr.mxu0 0.0
    %608 = vmatpush2.msra.mxu0 0.0
    %609 = vmatprep.subr.mxu0 0.0
    %610 = vmatpush2.msra.mxu0 0.0
    %611 = vmatprep.subr.mxu0 0.0
    %612 = vmatpush2.msra.mxu0 0.0
    %613 = vmatprep.subr.mxu0 0.0
    %614 = vmatpush2.msra.mxu0 0.0
    %615 = vmatprep.subr.mxu0 0.0
    %616 = vmatpush2.msra.mxu0 0.0
    %617 = vmatprep.subr.mxu0 0.0
    %618 = vmatpush2.msra.mxu0 0.0
    %619 = vmatprep.subr.mxu0 0.0
    %620 = vmatpush2.msra.mxu0 0.0
    %621 = vmatprep.subr.mxu0 0.0
    %622 = vmatpush2.msra.mxu0 0.0
    %623 = vmatprep.subr.mxu0 0.0
    %624 = vmatpush2.msra.mxu0 0.0
    %625 = vmatprep.subr.mxu0 0.0
    %626 = vmatpush2.msra.mxu0 0.0
    %627 = vmatprep.subr.mxu0 0.0
    %628 = vmatpush2.msra.mxu0 0.0
    %629 = vmatprep.mubr.f32.mxu0 0.0
    %630 = vmatmul.mubr.f32.gmra.mxu0 %v563
    %v631 = vpop.f32.mrf.mxu0
    %v632 = vadd.f32 0.0, %v631
    %v633 = vpop.f32.mrf.mxu0
    %634 = vdwg.mxu0
    %v635 = vmul.f32 %v632, %v537
    %v636 = vadd.f32 %v383, %v635
    %v637 = vmax.f32 %v636, 0.0
    %v638 = vld [vmem:[%s4] sm:$0xff]
    %v639 = vld [vmem:[%s4 + $0x8] sm:$0xff]
    %v640 = vld [vmem:[%s4 + $0x10] sm:$0xff]
    %v641 = vld [vmem:[%s4 + $0x40] sm:$0xff]
    %v642 = vld [vmem:[%s4 + $0x48] sm:$0xff]
    %v643 = vld [vmem:[%s4 + $0x50] sm:$0xff]
    %v644 = vld [vmem:[%s4 + $0x80] sm:$0xff]
    %v645 = vld [vmem:[%s4 + $0x88] sm:$0xff]
    %v646 = vld [vmem:[%s4 + $0x90] sm:$0xff]
    %v647 = vld [vmem:[%s4 + $0xc0] sm:$0xff]
    %v648 = vld [vmem:[%s4 + $0xc8] sm:$0xff]
    %v649 = vld [vmem:[%s4 + $0xd0] sm:$0xff]
    %s650 = scalar_lea.vmem %s4, 256
    %v651 = vld [vmem:[%s650] ss:$8 sm:$0x7]
    %v653 = vlaneseq
    %v654 = vshrl.u32 %v653, 7
    %v655 = vsub.s32 0, %v654
    %v656 = vrot.slane %v651, %v655
    %v657 = vlaneseq
    %v658 = vshrl.u32 %v657, 7
    %v659 = vsub.s32 1, %v658
    %v660 = vrot.slane %v651, %v659
    %v661 = vlaneseq
    %v662 = vshrl.u32 %v661, 7
    %v663 = vsub.s32 2, %v662
    %v664 = vrot.slane %v651, %v663
    %vm668 = vcmask 261120
    %v670 = vsel %vm668, %v637, 0
    %672 = vmatprep.subr.mxu0 0.0
    %673 = vmatpush1.msra.mxu0 0.0
    %674 = vmatprep.subr.mxu0 0.0
    %675 = vmatpush1.msra.mxu0 0.0
    %676 = vmatprep.subr.mxu0 0.0
    %677 = vmatpush1.msra.mxu0 0.0
    %678 = vmatprep.subr.mxu0 0.0
    %679 = vmatpush1.msra.mxu0 0.0
    %680 = vmatprep.subr.mxu0 0.0
    %681 = vmatpush1.msra.mxu0 0.0
    %682 = vmatprep.subr.mxu0 0.0
    %683 = vmatpush1.msra.mxu0 0.0
    %684 = vmatprep.subr.mxu0 0.0
    %685 = vmatpush1.msra.mxu0 0.0
    %686 = vmatprep.subr.mxu0 0.0
    %687 = vmatpush1.msra.mxu0 0.0
    %688 = vmatprep.subr.mxu0 0.0
    %689 = vmatpush1.msra.mxu0 0.0
    %690 = vmatprep.subr.mxu0 0.0
    %691 = vmatpush1.msra.mxu0 0.0
    %692 = vmatprep.subr.mxu0 0.0
    %693 = vmatpush1.msra.mxu0 0.0
    %694 = vmatprep.subr.mxu0 0.0
    %695 = vmatpush1.msra.mxu0 0.0
    %696 = vmatprep.subr.mxu0 %v648
    %697 = vmatpush1.msra.mxu0 %v647
    %698 = vmatprep.subr.mxu0 %v645
    %699 = vmatpush1.msra.mxu0 %v644
    %700 = vmatprep.subr.mxu0 %v642
    %701 = vmatpush1.msra.mxu0 %v641
    %702 = vmatprep.subr.mxu0 %v639
    %703 = vmatpush1.msra.mxu0 %v638
    %704 = vmatprep.subr.mxu0 0.0
    %705 = vmatpush2.msra.mxu0 0.0
    %706 = vmatprep.subr.mxu0 0.0
    %707 = vmatpush2.msra.mxu0 0.0
    %708 = vmatprep.subr.mxu0 0.0
    %709 = vmatpush2.msra.mxu0 0.0
    %710 = vmatprep.subr.mxu0 0.0
    %711 = vmatpush2.msra.mxu0 0.0
    %712 = vmatprep.subr.mxu0 0.0
    %713 = vmatpush2.msra.mxu0 0.0
    %714 = vmatprep.subr.mxu0 0.0
    %715 = vmatpush2.msra.mxu0 0.0
    %716 = vmatprep.subr.mxu0 0.0
    %717 = vmatpush2.msra.mxu0 0.0
    %718 = vmatprep.subr.mxu0 0.0
    %719 = vmatpush2.msra.mxu0 0.0
    %720 = vmatprep.subr.mxu0 0.0
    %721 = vmatpush2.msra.mxu0 0.0
    %722 = vmatprep.subr.mxu0 0.0
    %723 = vmatpush2.msra.mxu0 0.0
    %724 = vmatprep.subr.mxu0 0.0
    %725 = vmatpush2.msra.mxu0 0.0
    %726 = vmatprep.subr.mxu0 0.0
    %727 = vmatpush2.msra.mxu0 0.0
    %728 = vmatprep.subr.mxu0 0.0
    %729 = vmatpush2.msra.mxu0 0.0
    %730 = vmatprep.subr.mxu0 0.0
    %731 = vmatpush2.msra.mxu0 0.0
    %732 = vmatprep.subr.mxu0 0.0
    %733 = vmatpush2.msra.mxu0 0.0
    %734 = vmatprep.subr.mxu0 0.0
    %735 = vmatpush2.msra.mxu0 0.0
    %736 = vmatprep.mubr.f32.mxu0 0.0
    %737 = vmatmul.mubr.f32.gmra.mxu0 %v670
    %v738 = vpop.f32.mrf.mxu0
    %v739 = vadd.f32 %v656, %v738
    %v740 = vpop.f32.mrf.mxu0
    %v741 = vadd.f32 %v660, %v740
    %742 = vdwg.mxu0
    %743 = vmatprep.subr.mxu0 0.0
    %744 = vmatpush1.msra.mxu0 0.0
    %745 = vmatprep.subr.mxu0 0.0
    %746 = vmatpush1.msra.mxu0 0.0
    %747 = vmatprep.subr.mxu0 0.0
    %748 = vmatpush1.msra.mxu0 0.0
    %749 = vmatprep.subr.mxu0 0.0
    %750 = vmatpush1.msra.mxu0 0.0
    %751 = vmatprep.subr.mxu0 0.0
    %752 = vmatpush1.msra.mxu0 0.0
    %753 = vmatprep.subr.mxu0 0.0
    %754 = vmatpush1.msra.mxu0 0.0
    %755 = vmatprep.subr.mxu0 0.0
    %756 = vmatpush1.msra.mxu0 0.0
    %757 = vmatprep.subr.mxu0 0.0
    %758 = vmatpush1.msra.mxu0 0.0
    %759 = vmatprep.subr.mxu0 0.0
    %760 = vmatpush1.msra.mxu0 0.0
    %761 = vmatprep.subr.mxu0 0.0
    %762 = vmatpush1.msra.mxu0 0.0
    %763 = vmatprep.subr.mxu0 0.0
    %764 = vmatpush1.msra.mxu0 0.0
    %765 = vmatprep.subr.mxu0 0.0
    %766 = vmatpush1.msra.mxu0 0.0
    %767 = vmatprep.subr.mxu0 0.0
    %768 = vmatpush1.msra.mxu0 %v649
    %769 = vmatprep.subr.mxu0 0.0
    %770 = vmatpush1.msra.mxu0 %v646
    %771 = vmatprep.subr.mxu0 0.0
    %772 = vmatpush1.msra.mxu0 %v643
    %773 = vmatprep.subr.mxu0 0.0
    %774 = vmatpush1.msra.mxu0 %v640
    %775 = vmatprep.subr.mxu0 0.0
    %776 = vmatpush2.msra.mxu0 0.0
    %777 = vmatprep.subr.mxu0 0.0
    %778 = vmatpush2.msra.mxu0 0.0
    %779 = vmatprep.subr.mxu0 0.0
    %780 = vmatpush2.msra.mxu0 0.0
    %781 = vmatprep.subr.mxu0 0.0
    %782 = vmatpush2.msra.mxu0 0.0
    %783 = vmatprep.subr.mxu0 0.0
    %784 = vmatpush2.msra.mxu0 0.0
    %785 = vmatprep.subr.mxu0 0.0
    %786 = vmatpush2.msra.mxu0 0.0
    %787 = vmatprep.subr.mxu0 0.0
    %788 = vmatpush2.msra.mxu0 0.0
    %789 = vmatprep.subr.mxu0 0.0
    %790 = vmatpush2.msra.mxu0 0.0
    %791 = vmatprep.subr.mxu0 0.0
    %792 = vmatpush2.msra.mxu0 0.0
    %793 = vmatprep.subr.mxu0 0.0
    %794 = vmatpush2.msra.mxu0 0.0
    %795 = vmatprep.subr.mxu0 0.0
    %796 = vmatpush2.msra.mxu0 0.0
    %797 = vmatprep.subr.mxu0 0.0
    %798 = vmatpush2.msra.mxu0 0.0
    %799 = vmatprep.subr.mxu0 0.0
    %800 = vmatpush2.msra.mxu0 0.0
    %801 = vmatprep.subr.mxu0 0.0
    %802 = vmatpush2.msra.mxu0 0.0
    %803 = vmatprep.subr.mxu0 0.0
    %804 = vmatpush2.msra.mxu0 0.0
    %805 = vmatprep.subr.mxu0 0.0
    %806 = vmatpush2.msra.mxu0 0.0
    %807 = vmatprep.mubr.f32.mxu0 0.0
    %808 = vmatmul.mubr.f32.gmra.mxu0 %v670
    %v809 = vpop.f32.mrf.mxu0
    %v810 = vadd.f32 %v664, %v809
    %v811 = vpop.f32.mrf.mxu0
    %812 = vdwg.mxu0
    %v813 = vadd.f32 %v739, %v452
    %v814 = vxor.u32 %v813, 2147483648
    %v815 = vmul.f32 %v814, 1.442695
    %v816 = vpow.pop %v815
    %v817 = vadd.f32 %v816, 1.0
    %v818 = vrcp.pop %v817
    %v819 = vmul.f32 1.0, %v818
    %v820 = vadd.f32 %v741, %v454
    %v821 = vxor.u32 %v820, 2147483648
    %v822 = vmul.f32 %v821, 1.442695
    %v823 = vpow.pop %v822
    %v824 = vadd.f32 %v823, 1.0
    %v825 = vrcp.pop %v824
    %v826 = vmul.f32 1.0, %v825
    %v827 = vmul.f32 %v819, %v523
    %v828 = vadd.f32 %v810, %v827
    %v829 = vtanh.pop %v828
    %v830 = vsub.f32 1.0, %v826
    %v831 = vmul.f32 %v830, %v829
    %v832 = vmul.f32 %v826, %v250
    %v833 = vadd.f32 %v831, %v832
    %v834 = vld [vmem:[%s4 + $0x18] sm:$0xff]
    %v835 = vld [vmem:[%s4 + $0x58] sm:$0xff]
    %v836 = vld [vmem:[%s4 + $0x98] sm:$0xff]
    %v837 = vld [vmem:[%s4 + $0xd8] sm:$0xff]
    %v838 = vld [vmem:[%s4 + $0x118] ss:$0 sm:$0xff]
    %v840 = vsel %vm668, %v833, 0
    %842 = vmatprep.subr.mxu0 0.0
    %843 = vmatpush1.msra.mxu0 0.0
    %844 = vmatprep.subr.mxu0 0.0
    %845 = vmatpush1.msra.mxu0 0.0
    %846 = vmatprep.subr.mxu0 0.0
    %847 = vmatpush1.msra.mxu0 0.0
    %848 = vmatprep.subr.mxu0 0.0
    %849 = vmatpush1.msra.mxu0 0.0
    %850 = vmatprep.subr.mxu0 0.0
    %851 = vmatpush1.msra.mxu0 0.0
    %852 = vmatprep.subr.mxu0 0.0
    %853 = vmatpush1.msra.mxu0 0.0
    %854 = vmatprep.subr.mxu0 0.0
    %855 = vmatpush1.msra.mxu0 0.0
    %856 = vmatprep.subr.mxu0 0.0
    %857 = vmatpush1.msra.mxu0 0.0
    %858 = vmatprep.subr.mxu0 0.0
    %859 = vmatpush1.msra.mxu0 0.0
    %860 = vmatprep.subr.mxu0 0.0
    %861 = vmatpush1.msra.mxu0 0.0
    %862 = vmatprep.subr.mxu0 0.0
    %863 = vmatpush1.msra.mxu0 0.0
    %864 = vmatprep.subr.mxu0 0.0
    %865 = vmatpush1.msra.mxu0 0.0
    %866 = vmatprep.subr.mxu0 0.0
    %867 = vmatpush1.msra.mxu0 %v837
    %868 = vmatprep.subr.mxu0 0.0
    %869 = vmatpush1.msra.mxu0 %v836
    %870 = vmatprep.subr.mxu0 0.0
    %871 = vmatpush1.msra.mxu0 %v835
    %872 = vmatprep.subr.mxu0 0.0
    %873 = vmatpush1.msra.mxu0 %v834
    %874 = vmatprep.subr.mxu0 0.0
    %875 = vmatpush2.msra.mxu0 0.0
    %876 = vmatprep.subr.mxu0 0.0
    %877 = vmatpush2.msra.mxu0 0.0
    %878 = vmatprep.subr.mxu0 0.0
    %879 = vmatpush2.msra.mxu0 0.0
    %880 = vmatprep.subr.mxu0 0.0
    %881 = vmatpush2.msra.mxu0 0.0
    %882 = vmatprep.subr.mxu0 0.0
    %883 = vmatpush2.msra.mxu0 0.0
    %884 = vmatprep.subr.mxu0 0.0
    %885 = vmatpush2.msra.mxu0 0.0
    %886 = vmatprep.subr.mxu0 0.0
    %887 = vmatpush2.msra.mxu0 0.0
    %888 = vmatprep.subr.mxu0 0.0
    %889 = vmatpush2.msra.mxu0 0.0
    %890 = vmatprep.subr.mxu0 0.0
    %891 = vmatpush2.msra.mxu0 0.0
    %892 = vmatprep.subr.mxu0 0.0
    %893 = vmatpush2.msra.mxu0 0.0
    %894 = vmatprep.subr.mxu0 0.0
    %895 = vmatpush2.msra.mxu0 0.0
    %896 = vmatprep.subr.mxu0 0.0
    %897 = vmatpush2.msra.mxu0 0.0
    %898 = vmatprep.subr.mxu0 0.0
    %899 = vmatpush2.msra.mxu0 0.0
    %900 = vmatprep.subr.mxu0 0.0
    %901 = vmatpush2.msra.mxu0 0.0
    %902 = vmatprep.subr.mxu0 0.0
    %903 = vmatpush2.msra.mxu0 0.0
    %904 = vmatprep.subr.mxu0 0.0
    %905 = vmatpush2.msra.mxu0 0.0
    %906 = vmatprep.mubr.f32.mxu0 0.0
    %907 = vmatmul.mubr.f32.gmra.mxu0 %v840
    %v908 = vpop.f32.mrf.mxu0
    %v909 = vadd.f32 %v838, %v908
    %v910 = vpop.f32.mrf.mxu0
    %911 = vdwg.mxu0
    %v912 = vtanh.pop %v909
    %v913 = vld [vmem:[%s4 + $0x20] sm:$0xff]
    %v914 = vld [vmem:[%s4 + $0x60] sm:$0xff]
    %v915 = vld [vmem:[%s4 + $0xa0] sm:$0xff]
    %v916 = vld [vmem:[%s4 + $0xe0] sm:$0xff]
    %v917 = vld [vmem:[%s4 + $0x120] ss:$0 sm:$0xff]
    %v919 = vsel %vm668, %v912, 0
    %921 = vmatprep.subr.mxu0 0.0
    %922 = vmatpush1.msra.mxu0 0.0
    %923 = vmatprep.subr.mxu0 0.0
    %924 = vmatpush1.msra.mxu0 0.0
    %925 = vmatprep.subr.mxu0 0.0
    %926 = vmatpush1.msra.mxu0 0.0
    %927 = vmatprep.subr.mxu0 0.0
    %928 = vmatpush1.msra.mxu0 0.0
    %929 = vmatprep.subr.mxu0 0.0
    %930 = vmatpush1.msra.mxu0 0.0
    %931 = vmatprep.subr.mxu0 0.0
    %932 = vmatpush1.msra.mxu0 0.0
    %933 = vmatprep.subr.mxu0 0.0
    %934 = vmatpush1.msra.mxu0 0.0
    %935 = vmatprep.subr.mxu0 0.0
    %936 = vmatpush1.msra.mxu0 0.0
    %937 = vmatprep.subr.mxu0 0.0
    %938 = vmatpush1.msra.mxu0 0.0
    %939 = vmatprep.subr.mxu0 0.0
    %940 = vmatpush1.msra.mxu0 0.0
    %941 = vmatprep.subr.mxu0 0.0
    %942 = vmatpush1.msra.mxu0 0.0
    %943 = vmatprep.subr.mxu0 0.0
    %944 = vmatpush1.msra.mxu0 0.0
    %945 = vmatprep.subr.mxu0 0.0
    %946 = vmatpush1.msra.mxu0 %v916
    %947 = vmatprep.subr.mxu0 0.0
    %948 = vmatpush1.msra.mxu0 %v915
    %949 = vmatprep.subr.mxu0 0.0
    %950 = vmatpush1.msra.mxu0 %v914
    %951 = vmatprep.subr.mxu0 0.0
    %952 = vmatpush1.msra.mxu0 %v913
    %953 = vmatprep.subr.mxu0 0.0
    %954 = vmatpush2.msra.mxu0 0.0
    %955 = vmatprep.subr.mxu0 0.0
    %956 = vmatpush2.msra.mxu0 0.0
    %957 = vmatprep.subr.mxu0 0.0
    %958 = vmatpush2.msra.mxu0 0.0
    %959 = vmatprep.subr.mxu0 0.0
    %960 = vmatpush2.msra.mxu0 0.0
    %961 = vmatprep.subr.mxu0 0.0
    %962 = vmatpush2.msra.mxu0 0.0
    %963 = vmatprep.subr.mxu0 0.0
    %964 = vmatpush2.msra.mxu0 0.0
    %965 = vmatprep.subr.mxu0 0.0
    %966 = vmatpush2.msra.mxu0 0.0
    %967 = vmatprep.subr.mxu0 0.0
    %968 = vmatpush2.msra.mxu0 0.0
    %969 = vmatprep.subr.mxu0 0.0
    %970 = vmatpush2.msra.mxu0 0.0
    %971 = vmatprep.subr.mxu0 0.0
    %972 = vmatpush2.msra.mxu0 0.0
    %973 = vmatprep.subr.mxu0 0.0
    %974 = vmatpush2.msra.mxu0 0.0
    %975 = vmatprep.subr.mxu0 0.0
    %976 = vmatpush2.msra.mxu0 0.0
    %977 = vmatprep.subr.mxu0 0.0
    %978 = vmatpush2.msra.mxu0 0.0
    %979 = vmatprep.subr.mxu0 0.0
    %980 = vmatpush2.msra.mxu0 0.0
    %981 = vmatprep.subr.mxu0 0.0
    %982 = vmatpush2.msra.mxu0 0.0
    %983 = vmatprep.subr.mxu0 0.0
    %984 = vmatpush2.msra.mxu0 0.0
    %985 = vmatprep.mubr.f32.mxu0 0.0
    %986 = vmatmul.mubr.f32.gmra.mxu0 %v919
    %v987 = vpop.f32.mrf.mxu0
    %v988 = vadd.f32 %v917, %v987
    %v989 = vpop.f32.mrf.mxu0
    %990 = vdwg.mxu0
    %v991 = vtanh.pop %v988
    %v992 = vld [vmem:[%s4 + $0x28] sm:$0xff]
    %v993 = vld [vmem:[%s4 + $0x68] sm:$0xff]
    %v994 = vld [vmem:[%s4 + $0xa8] sm:$0xff]
    %v995 = vld [vmem:[%s4 + $0xe8] sm:$0xff]
    %v996 = vld [vmem:[%s4 + $0x128] ss:$0 sm:$0xff]
    %v998 = vsel %vm668, %v991, 0
    %1000 = vmatprep.subr.mxu0 0.0
    %1001 = vmatpush1.msra.mxu0 0.0
    %1002 = vmatprep.subr.mxu0 0.0
    %1003 = vmatpush1.msra.mxu0 0.0
    %1004 = vmatprep.subr.mxu0 0.0
    %1005 = vmatpush1.msra.mxu0 0.0
    %1006 = vmatprep.subr.mxu0 0.0
    %1007 = vmatpush1.msra.mxu0 0.0
    %1008 = vmatprep.subr.mxu0 0.0
    %1009 = vmatpush1.msra.mxu0 0.0
    %1010 = vmatprep.subr.mxu0 0.0
    %1011 = vmatpush1.msra.mxu0 0.0
    %1012 = vmatprep.subr.mxu0 0.0
    %1013 = vmatpush1.msra.mxu0 0.0
    %1014 = vmatprep.subr.mxu0 0.0
    %1015 = vmatpush1.msra.mxu0 0.0
    %1016 = vmatprep.subr.mxu0 0.0
    %1017 = vmatpush1.msra.mxu0 0.0
    %1018 = vmatprep.subr.mxu0 0.0
    %1019 = vmatpush1.msra.mxu0 0.0
    %1020 = vmatprep.subr.mxu0 0.0
    %1021 = vmatpush1.msra.mxu0 0.0
    %1022 = vmatprep.subr.mxu0 0.0
    %1023 = vmatpush1.msra.mxu0 0.0
    %1024 = vmatprep.subr.mxu0 0.0
    %1025 = vmatpush1.msra.mxu0 %v995
    %1026 = vmatprep.subr.mxu0 0.0
    %1027 = vmatpush1.msra.mxu0 %v994
    %1028 = vmatprep.subr.mxu0 0.0
    %1029 = vmatpush1.msra.mxu0 %v993
    %1030 = vmatprep.subr.mxu0 0.0
    %1031 = vmatpush1.msra.mxu0 %v992
    %1032 = vmatprep.subr.mxu0 0.0
    %1033 = vmatpush2.msra.mxu0 0.0
    %1034 = vmatprep.subr.mxu0 0.0
    %1035 = vmatpush2.msra.mxu0 0.0
    %1036 = vmatprep.subr.mxu0 0.0
    %1037 = vmatpush2.msra.mxu0 0.0
    %1038 = vmatprep.subr.mxu0 0.0
    %1039 = vmatpush2.msra.mxu0 0.0
    %1040 = vmatprep.subr.mxu0 0.0
    %1041 = vmatpush2.msra.mxu0 0.0
    %1042 = vmatprep.subr.mxu0 0.0
    %1043 = vmatpush2.msra.mxu0 0.0
    %1044 = vmatprep.subr.mxu0 0.0
    %1045 = vmatpush2.msra.mxu0 0.0
    %1046 = vmatprep.subr.mxu0 0.0
    %1047 = vmatpush2.msra.mxu0 0.0
    %1048 = vmatprep.subr.mxu0 0.0
    %1049 = vmatpush2.msra.mxu0 0.0
    %1050 = vmatprep.subr.mxu0 0.0
    %1051 = vmatpush2.msra.mxu0 0.0
    %1052 = vmatprep.subr.mxu0 0.0
    %1053 = vmatpush2.msra.mxu0 0.0
    %1054 = vmatprep.subr.mxu0 0.0
    %1055 = vmatpush2.msra.mxu0 0.0
    %1056 = vmatprep.subr.mxu0 0.0
    %1057 = vmatpush2.msra.mxu0 0.0
    %1058 = vmatprep.subr.mxu0 0.0
    %1059 = vmatpush2.msra.mxu0 0.0
    %1060 = vmatprep.subr.mxu0 0.0
    %1061 = vmatpush2.msra.mxu0 0.0
    %1062 = vmatprep.subr.mxu0 0.0
    %1063 = vmatpush2.msra.mxu0 0.0
    %1064 = vmatprep.mubr.f32.mxu0 0.0
    %1065 = vmatmul.mubr.f32.gmra.mxu0 %v998
    %v1066 = vpop.f32.mrf.mxu0
    %v1067 = vadd.f32 %v996, %v1066
    %v1068 = vpop.f32.mrf.mxu0
    %1069 = vdwg.mxu0
    %v1070 = vtanh.pop %v1067
    %v1071 = vld [vmem:[%s4 + $0x30] sm:$0xff]
    %v1072 = vld [vmem:[%s4 + $0x70] sm:$0xff]
    %v1073 = vld [vmem:[%s4 + $0xb0] sm:$0xff]
    %v1074 = vld [vmem:[%s4 + $0xf0] sm:$0xff]
    %v1075 = vld [vmem:[%s4 + $0x130] ss:$0 sm:$0xff]
    %v1077 = vsel %vm668, %v1070, 0
    %1079 = vmatprep.subr.mxu0 0.0
    %1080 = vmatpush1.msra.mxu0 0.0
    %1081 = vmatprep.subr.mxu0 0.0
    %1082 = vmatpush1.msra.mxu0 0.0
    %1083 = vmatprep.subr.mxu0 0.0
    %1084 = vmatpush1.msra.mxu0 0.0
    %1085 = vmatprep.subr.mxu0 0.0
    %1086 = vmatpush1.msra.mxu0 0.0
    %1087 = vmatprep.subr.mxu0 0.0
    %1088 = vmatpush1.msra.mxu0 0.0
    %1089 = vmatprep.subr.mxu0 0.0
    %1090 = vmatpush1.msra.mxu0 0.0
    %1091 = vmatprep.subr.mxu0 0.0
    %1092 = vmatpush1.msra.mxu0 0.0
    %1093 = vmatprep.subr.mxu0 0.0
    %1094 = vmatpush1.msra.mxu0 0.0
    %1095 = vmatprep.subr.mxu0 0.0
    %1096 = vmatpush1.msra.mxu0 0.0
    %1097 = vmatprep.subr.mxu0 0.0
    %1098 = vmatpush1.msra.mxu0 0.0
    %1099 = vmatprep.subr.mxu0 0.0
    %1100 = vmatpush1.msra.mxu0 0.0
    %1101 = vmatprep.subr.mxu0 0.0
    %1102 = vmatpush1.msra.mxu0 0.0
    %1103 = vmatprep.subr.mxu0 0.0
    %1104 = vmatpush1.msra.mxu0 %v1074
    %1105 = vmatprep.subr.mxu0 0.0
    %1106 = vmatpush1.msra.mxu0 %v1073
    %1107 = vmatprep.subr.mxu0 0.0
    %1108 = vmatpush1.msra.mxu0 %v1072
    %1109 = vmatprep.subr.mxu0 0.0
    %1110 = vmatpush1.msra.mxu0 %v1071
    %1111 = vmatprep.subr.mxu0 0.0
    %1112 = vmatpush2.msra.mxu0 0.0
    %1113 = vmatprep.subr.mxu0 0.0
    %1114 = vmatpush2.msra.mxu0 0.0
    %1115 = vmatprep.subr.mxu0 0.0
    %1116 = vmatpush2.msra.mxu0 0.0
    %1117 = vmatprep.subr.mxu0 0.0
    %1118 = vmatpush2.msra.mxu0 0.0
    %1119 = vmatprep.subr.mxu0 0.0
    %1120 = vmatpush2.msra.mxu0 0.0
    %1121 = vmatprep.subr.mxu0 0.0
    %1122 = vmatpush2.msra.mxu0 0.0
    %1123 = vmatprep.subr.mxu0 0.0
    %1124 = vmatpush2.msra.mxu0 0.0
    %1125 = vmatprep.subr.mxu0 0.0
    %1126 = vmatpush2.msra.mxu0 0.0
    %1127 = vmatprep.subr.mxu0 0.0
    %1128 = vmatpush2.msra.mxu0 0.0
    %1129 = vmatprep.subr.mxu0 0.0
    %1130 = vmatpush2.msra.mxu0 0.0
    %1131 = vmatprep.subr.mxu0 0.0
    %1132 = vmatpush2.msra.mxu0 0.0
    %1133 = vmatprep.subr.mxu0 0.0
    %1134 = vmatpush2.msra.mxu0 0.0
    %1135 = vmatprep.subr.mxu0 0.0
    %1136 = vmatpush2.msra.mxu0 0.0
    %1137 = vmatprep.subr.mxu0 0.0
    %1138 = vmatpush2.msra.mxu0 0.0
    %1139 = vmatprep.subr.mxu0 0.0
    %1140 = vmatpush2.msra.mxu0 0.0
    %1141 = vmatprep.subr.mxu0 0.0
    %1142 = vmatpush2.msra.mxu0 0.0
    %1143 = vmatprep.mubr.f32.mxu0 0.0
    %1144 = vmatmul.mubr.f32.gmra.mxu0 %v1077
    %v1145 = vpop.f32.mrf.mxu0
    %v1146 = vadd.f32 %v1075, %v1145
    %v1147 = vpop.f32.mrf.mxu0
    %1148 = vdwg.mxu0
    %vm1149 = vcmask 123904
    %v1150 = vsel %vm1149, %v1146, -inf
    %1151 = vmax.xlane.f32.xlu0 %v1150
    %v1152 = vpop.xlane.xlu0 %1151
    %v1153 = vsub.f32 %v1146, %v1152
    %v1154 = vmul.f32 %v1153, 1.442695
    %v1155 = vpow.pop %v1154
    %v1156 = vsel %vm1149, %v1155, 0.0
    %1157 = vadd.xlane.f32.xlu0 %v1156
    %v1158 = vpop.xlane.xlu0 %1157
    %v1159 = vlog2.pop %v1158
    %v1160 = vmul.f32 %v1159, 0.6931472
    %v1161 = vsub.f32 %v1153, %v1160
    %vm1162 = vcmask 254976
    %1163 = vst.msk [vmem:[#allocation2] sm:$0x3] %vm1162, %v833
    %1164 = vst.msk [vmem:[%s5] sm:$0x3] %vm526, %v538
    %1165 = vst.msk [vmem:[%s5 + $0x2] sm:$0x3] %vm1149, %v1161
    %1166 = vst.msk [vmem:[%s5 + $0x4] sm:$0x3] %vm1162, %v833
    // Predicated region
    $region30: #{batch_attn_decoder_forward.1} parent=1 // pred_check
      _
    $region31: #{batch_attn_decoder_forward.1} parent=1 // pred_check_branch
      %1168 = sbr.rel (0) target = $region33
    $region32: #{batch_attn_decoder_forward.1} parent=1 // pred_region
      _
    $region33: #{batch_attn_decoder_forward.1} parent=1 // pred_fallthru
      _
    // Predicated region
    $region34: #{batch_attn_decoder_forward.1} parent=1 // pred_check
      _
    $region35: #{batch_attn_decoder_forward.1} parent=1 // pred_check_branch
      %1170 = sbr.rel (0) target = $region37
    $region36: #{batch_attn_decoder_forward.1} parent=1 // pred_region
      _
    $region37: #{batch_attn_decoder_forward.1} parent=1 // pred_fallthru
      _
    %1171 = vsyncpa [#allocation5], 1

</llo_original>
